<compile_context>
chip_gen: v7x
topology: tpu7x:2x2x1
jax: 0.10.0
libtpu: 0.0.40
codegen_flags: <defaults>
</compile_context>

<pallas_src>
import functools

import jax
import jax.numpy as jnp
from jax import lax
from jax.experimental import pallas as pl
from jax.experimental.pallas import tpu as pltpu


# ---------------------------------------------------------------------------
# Model constants (mirror LSTMNetWork class attributes)
# ---------------------------------------------------------------------------
NUM_RECORD_MCARD_ACTION = 312
NUM_RECORD_KTYPE_ACTION = 5
NUM_RECORD_KLEN_ACTION = 8
RECORD_MCARD_EMB_DIM = 100
RECORD_KTYPE_EMB_DIM = 10
RECORD_KLEN_EMB_DIM = 30
RECORD_CONCAT_DIM = RECORD_MCARD_EMB_DIM + RECORD_KTYPE_EMB_DIM + RECORD_KLEN_EMB_DIM  # 140


# ---------------------------------------------------------------------------
# Fused multi-layer LSTM kernel (time-major, whole sequence resident in vregs).
#
# Kernel argument order:
#   gx0_ref                  (T*B_pad, 4H) bf16   layer-0 input gates (x @ W_ih0 + b0)
#   mask_ref                 (T*B_pad, 1)  f32    1.0 where t < seq_true_len[b]
#   wih_refs[l], l=1..L-1    (H, 4H)       bf16
#   b_refs[l],   l=1..L-1    (1, 4H)       f32
#   whh_refs[l], l=0..L-1    (H, 4H)       bf16
#   out_ref                  (B_pad, H)    f32    final hidden state, top layer
# ---------------------------------------------------------------------------
def make_fused_lstm_kernel(T, B_pad, H, num_layers):
    n_rest = num_layers - 1

    def kernel(gx0_ref, mask_ref, *args):
        wih_refs = args[0:n_rest]
        b_refs = args[n_rest:2 * n_rest]
        whh_refs = args[2 * n_rest:2 * n_rest + num_layers]
        out_ref = args[2 * n_rest + num_layers]

        # Hoisted constants: lane mask selecting the g (cell-candidate) gate
        # block, plus the x2 pre-scale used for tanh(x) = 2*sigmoid(2x) - 1.
        lane = lax.broadcasted_iota(jnp.int32, (B_pad, 4 * H), 1)
        is_g = (lane >= 2 * H) & (lane < 3 * H)
        g_scale = jnp.where(is_g, 2.0, 1.0).astype(jnp.float32)

        # Per-timestep validity mask (freezes h/c past each true length).
        mask_all = mask_ref[...]                       # (T*B_pad, 1) f32

        # Layer-0 input gates, precomputed in the wrapper; loaded once, kept
        # in vregs (f32 for the elementwise path).
        gx_all = gx0_ref[...].astype(jnp.float32)      # (T*B_pad, 4H)

        for layer in range(num_layers):
            w_hh = whh_refs[layer][...]                # (H, 4H) bf16, hoisted
            is_top = layer == num_layers - 1

            h = jnp.zeros((B_pad, H), jnp.float32)
            c = jnp.zeros((B_pad, H), jnp.float32)
            h_seq = []

            # Small static T: fully unrolled, everything stays in vregs.
            for t in range(T):
                gx_t = gx_all[t * B_pad:(t + 1) * B_pad, :]
                gates = gx_t + jnp.dot(h.astype(jnp.bfloat16), w_hh,
                                       preferred_element_type=jnp.float32)
                # One full-width sigmoid; g-lanes get tanh via 2*sigmoid(2x)-1.
                s = jax.nn.sigmoid(gates * g_scale)
                act = jnp.where(is_g, 2.0 * s - 1.0, s)
                # PyTorch gate order: input, forget, cell(g), output
                i_g = act[:, 0:H]
                f_g = act[:, H:2 * H]
                g_g = act[:, 2 * H:3 * H]
                o_g = act[:, 3 * H:4 * H]
                c_new = f_g * c + i_g * g_g
                h_new = o_g * jnp.tanh(c_new)
                valid = mask_all[t * B_pad:(t + 1) * B_pad, :] > 0.5
                c = jnp.where(valid, c_new, c)
                h = jnp.where(valid, h_new, h)
                if not is_top:
                    h_seq.append(h)

            if not is_top:
                # Hoisted input projection for the next layer: one bulk GEMM on
                # the stacked per-step outputs (no VMEM round-trip).
                stacked = jnp.concatenate(h_seq, axis=0).astype(jnp.bfloat16)
                gx_all = (jnp.dot(stacked, wih_refs[layer][...],
                                  preferred_element_type=jnp.float32)
                          + b_refs[layer][...])
            else:
                out_ref[...] = h

    return kernel


def run_fused_lstm(gx0, mask, wih_rest, b_rest, whh_all, T, B_pad, H, num_layers):
    kernel = make_fused_lstm_kernel(T, B_pad, H, num_layers)
    vmem = pl.BlockSpec(memory_space=pltpu.MemorySpace.VMEM)
    inputs = [gx0, mask, *wih_rest, *b_rest, *whh_all]

    def nbytes(x):
        return int(x.size) * int(jnp.dtype(x.dtype).itemsize)

    resident = sum(nbytes(x) for x in inputs) + B_pad * H * 4
    vmem_limit = int(min(max(4 * resident + (4 << 20), 16 << 20), 64 << 20))

    return pl.pallas_call(
        kernel,
        out_shape=jax.ShapeDtypeStruct((B_pad, H), jnp.float32),
        in_specs=[vmem] * len(inputs),
        out_specs=vmem,
        compiler_params=pltpu.CompilerParams(vmem_limit_bytes=vmem_limit),
    )(*inputs)


# ---------------------------------------------------------------------------
# Parameters
# ---------------------------------------------------------------------------
def init_params(key, output_dim, num_layers):
    keys = jax.random.split(key, 4 + 4 * num_layers)
    params = {
        # nn.Embedding default init: N(0, 1)
        "emb_mcard": jax.random.normal(
            keys[0], (NUM_RECORD_MCARD_ACTION, RECORD_MCARD_EMB_DIM), jnp.float32),
        "emb_ktype": jax.random.normal(
            keys[1], (NUM_RECORD_KTYPE_ACTION, RECORD_KTYPE_EMB_DIM), jnp.float32),
        "emb_klen": jax.random.normal(
            keys[2], (NUM_RECORD_KLEN_ACTION, RECORD_KLEN_EMB_DIM), jnp.float32),
    }
    H = output_dim
    bound = 1.0 / jnp.sqrt(jnp.float32(H))
    for layer in range(num_layers):
        d_in = RECORD_CONCAT_DIM if layer == 0 else H
        k0, k1, k2, k3 = keys[4 + 4 * layer: 8 + 4 * layer]
        # stored pre-transposed: (D_in, 4H) and (H, 4H), gate column order i,f,g,o
        params[f"w_ih_t_{layer}"] = jax.random.uniform(
            k0, (d_in, 4 * H), jnp.float32, -bound, bound)
        params[f"w_hh_t_{layer}"] = jax.random.uniform(
            k1, (H, 4 * H), jnp.float32, -bound, bound)
        b_ih = jax.random.uniform(k2, (4 * H,), jnp.float32, -bound, bound)
        b_hh = jax.random.uniform(k3, (4 * H,), jnp.float32, -bound, bound)
        params[f"b_{layer}"] = (b_ih + b_hh).reshape(1, 4 * H)
    return params


def prepare_inference_params(params, num_layers):
    """One-time (parameter-load-time) preprocessing.

    Folds the three embedding tables into the layer-0 input projection:
      concat(e_mc, e_kt, e_kl) @ W_ih0
        == e_mc @ W_ih0[:100] + e_kt @ W_ih0[100:110] + e_kl @ W_ih0[110:140]
    and casts the MXU weight operands to bf16.
    """
    w_ih0 = params["w_ih_t_0"]                                    # (140, 4H)
    prepped = {
        "tbl_mc": jnp.dot(params["emb_mcard"], w_ih0[0:RECORD_MCARD_EMB_DIM]),
        "tbl_kt": jnp.dot(params["emb_ktype"],
                          w_ih0[RECORD_MCARD_EMB_DIM:
                                RECORD_MCARD_EMB_DIM + RECORD_KTYPE_EMB_DIM]),
        "tbl_kl": jnp.dot(params["emb_klen"],
                          w_ih0[RECORD_MCARD_EMB_DIM + RECORD_KTYPE_EMB_DIM:
                                RECORD_CONCAT_DIM]),
        "b_0": params["b_0"],
    }
    for layer in range(num_layers):
        prepped[f"w_hh_t_{layer}"] = params[f"w_hh_t_{layer}"].astype(jnp.bfloat16)
        if layer >= 1:
            prepped[f"w_ih_t_{layer}"] = params[f"w_ih_t_{layer}"].astype(jnp.bfloat16)
            prepped[f"b_{layer}"] = params[f"b_{layer}"]
    return jax.tree_util.tree_map(jax.device_put, prepped)


# ---------------------------------------------------------------------------
# Forward
# ---------------------------------------------------------------------------
@functools.partial(jax.jit, static_argnames=("num_layers",))
def lstm_network_forward(prepped, record_mcard, record_ktype, record_klen,
                         num_layers):
    B, T = record_mcard.shape
    H = prepped["w_hh_t_0"].shape[0]
    B_pad = ((B + 7) // 8) * 8          # sublane-align the batch
    pad_b = B_pad - B

    # seq_true_len mirrors the first line of forward(); used to freeze the
    # recurrence at each sequence's true end (packed-sequence approximation).
    seq_true_len = jnp.sum(jnp.sign(record_mcard), axis=-1).astype(jnp.int32)

    # Transpose the tiny int32 index arrays to time-major and pad the batch, so
    # gx0 is produced directly time-major (no HBM transpose of the big tensor).
    def to_time_major_padded(idx):
        idx_t = jnp.transpose(idx)                         # (T, B)
        return jnp.pad(idx_t, ((0, 0), (0, pad_b)))        # (T, B_pad)

    mc = to_time_major_padded(record_mcard)
    kt = to_time_major_padded(record_ktype)
    kl = to_time_major_padded(record_klen)

    # Layer-0 input gates: x @ W_ih0 + b0, via the folded per-token gate tables.
    # (dropout on the embeddings is identity in eval mode)
    gx0 = (jnp.take(prepped["tbl_mc"], mc, axis=0)
           + jnp.take(prepped["tbl_kt"], kt, axis=0)
           + jnp.take(prepped["tbl_kl"], kl, axis=0)
           + prepped["b_0"])                               # (T, B_pad, 4H) f32
    gx0 = gx0.reshape(T * B_pad, 4 * H).astype(jnp.bfloat16)

    lens = jnp.pad(seq_true_len, (0, pad_b))               # padded rows -> len 0
    mask = (jnp.arange(T, dtype=jnp.int32)[:, None] < lens[None, :])
    mask = mask.astype(jnp.float32).reshape(T * B_pad, 1)

    wih_rest = [prepped[f"w_ih_t_{l}"] for l in range(1, num_layers)]
    b_rest = [prepped[f"b_{l}"] for l in range(1, num_layers)]
    whh_all = [prepped[f"w_hh_t_{l}"] for l in range(num_layers)]

    out = run_fused_lstm(gx0, mask, wih_rest, b_rest, whh_all,
                         T, B_pad, H, num_layers)
    return out[:B]                                          # drop batch padding


if __name__ == "__main__":
    B, T = 2, 8
    OUTPUT_DIM = 32
    NUM_LAYERS = 2
    DROPOUT_RATE = 0.5  # unused in eval mode

    key = jax.random.PRNGKey(0)
    k_param, k_mc, k_kt, k_kl = jax.random.split(key, 4)

    params = init_params(k_param, OUTPUT_DIM, NUM_LAYERS)
    prepped = prepare_inference_params(params, NUM_LAYERS)

    record_mcard = jax.random.randint(k_mc, (B, T), 1, NUM_RECORD_MCARD_ACTION,
                                      dtype=jnp.int32)
    record_ktype = jax.random.randint(k_kt, (B, T), 0, NUM_RECORD_KTYPE_ACTION,
                                      dtype=jnp.int32)
    record_klen = jax.random.randint(k_kl, (B, T), 0, NUM_RECORD_KLEN_ACTION,
                                     dtype=jnp.int32)

    out = lstm_network_forward(prepped, record_mcard, record_ktype, record_klen,
                               num_layers=NUM_LAYERS)
    out = jax.block_until_ready(out)
    assert out.shape == (B, OUTPUT_DIM), out.shape
    assert jnp.all(jnp.isfinite(out))
    print("KERNEL_OK")
</pallas_src>

<mosaic_0001>
module attributes {stable_mosaic.version = 11 : i64} {
  func.func @kernel(%arg0: memref<64x128xbf16, #tpu.memory_space<vmem>>, %arg1: memref<64x1xf32, #tpu.memory_space<vmem>>, %arg2: memref<32x128xbf16, #tpu.memory_space<vmem>>, %arg3: memref<1x128xf32, #tpu.memory_space<vmem>>, %arg4: memref<32x128xbf16, #tpu.memory_space<vmem>>, %arg5: memref<32x128xbf16, #tpu.memory_space<vmem>>, %arg6: memref<8x32xf32, #tpu.memory_space<vmem>>) attributes {dimension_semantics = [], scalar_prefetch = 0 : i64, scratch_operands = 0 : i64, tpu.core_type = #tpu.core_type<tc>} {
    %0 = tpu.iota {dimensions = array<i32: 1>} : vector<8x128xi32>
    %c64_i32 = arith.constant 64 : i32
    %1 = vector.broadcast %c64_i32 : i32 to vector<8x128xi32>
    %2 = arith.cmpi sge, %0, %1 : vector<8x128xi32>
    %c96_i32 = arith.constant 96 : i32
    %3 = vector.broadcast %c96_i32 : i32 to vector<8x128xi32>
    %4 = arith.cmpi slt, %0, %3 : vector<8x128xi32>
    %5 = arith.andi %2, %4 : vector<8x128xi1>
    %cst = arith.constant 2.000000e+00 : f32
    %cst_0 = arith.constant 1.000000e+00 : f32
    %6 = vector.broadcast %cst : f32 to vector<8x128xf32>
    %7 = vector.broadcast %cst_0 : f32 to vector<8x128xf32>
    %8 = arith.select %5, %6, %7 : vector<8x128xi1>, vector<8x128xf32>
    %c0 = arith.constant 0 : index
    %c0_1 = arith.constant 0 : index
    %9 = vector.load %arg1[%c0, %c0_1] : memref<64x1xf32, #tpu.memory_space<vmem>>, vector<64x1xf32>
    %c0_2 = arith.constant 0 : index
    %c0_3 = arith.constant 0 : index
    %10 = vector.load %arg0[%c0_2, %c0_3] : memref<64x128xbf16, #tpu.memory_space<vmem>>, vector<64x128xbf16>
    %11 = arith.extf %10 : vector<64x128xbf16> to vector<64x128xf32>
    %c0_4 = arith.constant 0 : index
    %c0_5 = arith.constant 0 : index
    %12 = vector.load %arg4[%c0_4, %c0_5] : memref<32x128xbf16, #tpu.memory_space<vmem>>, vector<32x128xbf16>
    %cst_6 = arith.constant 0.000000e+00 : f32
    %13 = vector.broadcast %cst_6 : f32 to vector<8x32xf32>
    %cst_7 = arith.constant 0.000000e+00 : f32
    %14 = vector.broadcast %cst_7 : f32 to vector<8x32xf32>
    %15 = vector.extract_strided_slice %11 {offsets = [0, 0], sizes = [8, 128], strides = [1, 1]} : vector<64x128xf32> to vector<8x128xf32>
    %16 = arith.truncf %13 : vector<8x32xf32> to vector<8x32xbf16>
    %cst_8 = arith.constant dense<0.000000e+00> : vector<8x128xf32>
    %17 = tpu.matmul %16, %12, %cst_8 {dimension_numbers = #tpu.dot_dimension_numbers<[1], [0], [0], [1], [0, 0, 1, 1], [], []>} : vector<8x32xbf16>, vector<32x128xbf16>, vector<8x128xf32> -> vector<8x128xf32>
    %18 = arith.addf %15, %17 : vector<8x128xf32>
    %19 = arith.mulf %18, %8 : vector<8x128xf32>
    %20 = arith.negf %19 : vector<8x128xf32>
    %21 = math.exp %20 : vector<8x128xf32>
    %cst_9 = arith.constant 1.000000e+00 : f32
    %22 = vector.broadcast %cst_9 : f32 to vector<8x128xf32>
    %23 = arith.addf %22, %21 : vector<8x128xf32>
    %24 = arith.divf %22, %23 : vector<8x128xf32>
    %cst_10 = arith.constant 2.000000e+00 : f32
    %25 = vector.broadcast %cst_10 : f32 to vector<8x128xf32>
    %26 = arith.mulf %25, %24 : vector<8x128xf32>
    %cst_11 = arith.constant 1.000000e+00 : f32
    %27 = vector.broadcast %cst_11 : f32 to vector<8x128xf32>
    %28 = arith.subf %26, %27 : vector<8x128xf32>
    %29 = arith.select %5, %28, %24 : vector<8x128xi1>, vector<8x128xf32>
    %30 = vector.extract_strided_slice %29 {offsets = [0, 0], sizes = [8, 32], strides = [1, 1]} : vector<8x128xf32> to vector<8x32xf32>
    %31 = vector.extract_strided_slice %29 {offsets = [0, 32], sizes = [8, 32], strides = [1, 1]} : vector<8x128xf32> to vector<8x32xf32>
    %32 = vector.extract_strided_slice %29 {offsets = [0, 64], sizes = [8, 32], strides = [1, 1]} : vector<8x128xf32> to vector<8x32xf32>
    %33 = vector.extract_strided_slice %29 {offsets = [0, 96], sizes = [8, 32], strides = [1, 1]} : vector<8x128xf32> to vector<8x32xf32>
    %34 = arith.mulf %31, %14 : vector<8x32xf32>
    %35 = arith.mulf %30, %32 : vector<8x32xf32>
    %36 = arith.addf %34, %35 : vector<8x32xf32>
    %37 = math.tanh %36 : vector<8x32xf32>
    %38 = arith.mulf %33, %37 : vector<8x32xf32>
    %39 = vector.extract_strided_slice %9 {offsets = [0, 0], sizes = [8, 1], strides = [1, 1]} : vector<64x1xf32> to vector<8x1xf32>
    %cst_12 = arith.constant 5.000000e-01 : f32
    %40 = vector.broadcast %cst_12 : f32 to vector<8x1xf32>
    %41 = arith.cmpf ogt, %39, %40 : vector<8x1xf32>
    %42 = vector.shape_cast %41 : vector<8x1xi1> to vector<8x1xi1>
    %43 = vector.broadcast %42 : vector<8x1xi1> to vector<8x32xi1>
    %44 = arith.select %43, %36, %14 : vector<8x32xi1>, vector<8x32xf32>
    %45 = vector.shape_cast %41 : vector<8x1xi1> to vector<8x1xi1>
    %46 = vector.broadcast %45 : vector<8x1xi1> to vector<8x32xi1>
    %47 = arith.select %46, %38, %13 : vector<8x32xi1>, vector<8x32xf32>
    %48 = vector.extract_strided_slice %11 {offsets = [8, 0], sizes = [8, 128], strides = [1, 1]} : vector<64x128xf32> to vector<8x128xf32>
    %49 = arith.truncf %47 : vector<8x32xf32> to vector<8x32xbf16>
    %cst_13 = arith.constant dense<0.000000e+00> : vector<8x128xf32>
    %50 = tpu.matmul %49, %12, %cst_13 {dimension_numbers = #tpu.dot_dimension_numbers<[1], [0], [0], [1], [0, 0, 1, 1], [], []>} : vector<8x32xbf16>, vector<32x128xbf16>, vector<8x128xf32> -> vector<8x128xf32>
    %51 = arith.addf %48, %50 : vector<8x128xf32>
    %52 = arith.mulf %51, %8 : vector<8x128xf32>
    %53 = arith.negf %52 : vector<8x128xf32>
    %54 = math.exp %53 : vector<8x128xf32>
    %cst_14 = arith.constant 1.000000e+00 : f32
    %55 = vector.broadcast %cst_14 : f32 to vector<8x128xf32>
    %56 = arith.addf %55, %54 : vector<8x128xf32>
    %57 = arith.divf %55, %56 : vector<8x128xf32>
    %cst_15 = arith.constant 2.000000e+00 : f32
    %58 = vector.broadcast %cst_15 : f32 to vector<8x128xf32>
    %59 = arith.mulf %58, %57 : vector<8x128xf32>
    %cst_16 = arith.constant 1.000000e+00 : f32
    %60 = vector.broadcast %cst_16 : f32 to vector<8x128xf32>
    %61 = arith.subf %59, %60 : vector<8x128xf32>
    %62 = arith.select %5, %61, %57 : vector<8x128xi1>, vector<8x128xf32>
    %63 = vector.extract_strided_slice %62 {offsets = [0, 0], sizes = [8, 32], strides = [1, 1]} : vector<8x128xf32> to vector<8x32xf32>
    %64 = vector.extract_strided_slice %62 {offsets = [0, 32], sizes = [8, 32], strides = [1, 1]} : vector<8x128xf32> to vector<8x32xf32>
    %65 = vector.extract_strided_slice %62 {offsets = [0, 64], sizes = [8, 32], strides = [1, 1]} : vector<8x128xf32> to vector<8x32xf32>
    %66 = vector.extract_strided_slice %62 {offsets = [0, 96], sizes = [8, 32], strides = [1, 1]} : vector<8x128xf32> to vector<8x32xf32>
    %67 = arith.mulf %64, %44 : vector<8x32xf32>
    %68 = arith.mulf %63, %65 : vector<8x32xf32>
    %69 = arith.addf %67, %68 : vector<8x32xf32>
    %70 = math.tanh %69 : vector<8x32xf32>
    %71 = arith.mulf %66, %70 : vector<8x32xf32>
    %72 = vector.extract_strided_slice %9 {offsets = [8, 0], sizes = [8, 1], strides = [1, 1]} : vector<64x1xf32> to vector<8x1xf32>
    %cst_17 = arith.constant 5.000000e-01 : f32
    %73 = vector.broadcast %cst_17 : f32 to vector<8x1xf32>
    %74 = arith.cmpf ogt, %72, %73 : vector<8x1xf32>
    %75 = vector.shape_cast %74 : vector<8x1xi1> to vector<8x1xi1>
    %76 = vector.broadcast %75 : vector<8x1xi1> to vector<8x32xi1>
    %77 = arith.select %76, %69, %44 : vector<8x32xi1>, vector<8x32xf32>
    %78 = vector.shape_cast %74 : vector<8x1xi1> to vector<8x1xi1>
    %79 = vector.broadcast %78 : vector<8x1xi1> to vector<8x32xi1>
    %80 = arith.select %79, %71, %47 : vector<8x32xi1>, vector<8x32xf32>
    %81 = vector.extract_strided_slice %11 {offsets = [16, 0], sizes = [8, 128], strides = [1, 1]} : vector<64x128xf32> to vector<8x128xf32>
    %82 = arith.truncf %80 : vector<8x32xf32> to vector<8x32xbf16>
    %cst_18 = arith.constant dense<0.000000e+00> : vector<8x128xf32>
    %83 = tpu.matmul %82, %12, %cst_18 {dimension_numbers = #tpu.dot_dimension_numbers<[1], [0], [0], [1], [0, 0, 1, 1], [], []>} : vector<8x32xbf16>, vector<32x128xbf16>, vector<8x128xf32> -> vector<8x128xf32>
    %84 = arith.addf %81, %83 : vector<8x128xf32>
    %85 = arith.mulf %84, %8 : vector<8x128xf32>
    %86 = arith.negf %85 : vector<8x128xf32>
    %87 = math.exp %86 : vector<8x128xf32>
    %cst_19 = arith.constant 1.000000e+00 : f32
    %88 = vector.broadcast %cst_19 : f32 to vector<8x128xf32>
    %89 = arith.addf %88, %87 : vector<8x128xf32>
    %90 = arith.divf %88, %89 : vector<8x128xf32>
    %cst_20 = arith.constant 2.000000e+00 : f32
    %91 = vector.broadcast %cst_20 : f32 to vector<8x128xf32>
    %92 = arith.mulf %91, %90 : vector<8x128xf32>
    %cst_21 = arith.constant 1.000000e+00 : f32
    %93 = vector.broadcast %cst_21 : f32 to vector<8x128xf32>
    %94 = arith.subf %92, %93 : vector<8x128xf32>
    %95 = arith.select %5, %94, %90 : vector<8x128xi1>, vector<8x128xf32>
    %96 = vector.extract_strided_slice %95 {offsets = [0, 0], sizes = [8, 32], strides = [1, 1]} : vector<8x128xf32> to vector<8x32xf32>
    %97 = vector.extract_strided_slice %95 {offsets = [0, 32], sizes = [8, 32], strides = [1, 1]} : vector<8x128xf32> to vector<8x32xf32>
    %98 = vector.extract_strided_slice %95 {offsets = [0, 64], sizes = [8, 32], strides = [1, 1]} : vector<8x128xf32> to vector<8x32xf32>
    %99 = vector.extract_strided_slice %95 {offsets = [0, 96], sizes = [8, 32], strides = [1, 1]} : vector<8x128xf32> to vector<8x32xf32>
    %100 = arith.mulf %97, %77 : vector<8x32xf32>
    %101 = arith.mulf %96, %98 : vector<8x32xf32>
    %102 = arith.addf %100, %101 : vector<8x32xf32>
    %103 = math.tanh %102 : vector<8x32xf32>
    %104 = arith.mulf %99, %103 : vector<8x32xf32>
    %105 = vector.extract_strided_slice %9 {offsets = [16, 0], sizes = [8, 1], strides = [1, 1]} : vector<64x1xf32> to vector<8x1xf32>
    %cst_22 = arith.constant 5.000000e-01 : f32
    %106 = vector.broadcast %cst_22 : f32 to vector<8x1xf32>
    %107 = arith.cmpf ogt, %105, %106 : vector<8x1xf32>
    %108 = vector.shape_cast %107 : vector<8x1xi1> to vector<8x1xi1>
    %109 = vector.broadcast %108 : vector<8x1xi1> to vector<8x32xi1>
    %110 = arith.select %109, %102, %77 : vector<8x32xi1>, vector<8x32xf32>
    %111 = vector.shape_cast %107 : vector<8x1xi1> to vector<8x1xi1>
    %112 = vector.broadcast %111 : vector<8x1xi1> to vector<8x32xi1>
    %113 = arith.select %112, %104, %80 : vector<8x32xi1>, vector<8x32xf32>
    %114 = vector.extract_strided_slice %11 {offsets = [24, 0], sizes = [8, 128], strides = [1, 1]} : vector<64x128xf32> to vector<8x128xf32>
    %115 = arith.truncf %113 : vector<8x32xf32> to vector<8x32xbf16>
    %cst_23 = arith.constant dense<0.000000e+00> : vector<8x128xf32>
    %116 = tpu.matmul %115, %12, %cst_23 {dimension_numbers = #tpu.dot_dimension_numbers<[1], [0], [0], [1], [0, 0, 1, 1], [], []>} : vector<8x32xbf16>, vector<32x128xbf16>, vector<8x128xf32> -> vector<8x128xf32>
    %117 = arith.addf %114, %116 : vector<8x128xf32>
    %118 = arith.mulf %117, %8 : vector<8x128xf32>
    %119 = arith.negf %118 : vector<8x128xf32>
    %120 = math.exp %119 : vector<8x128xf32>
    %cst_24 = arith.constant 1.000000e+00 : f32
    %121 = vector.broadcast %cst_24 : f32 to vector<8x128xf32>
    %122 = arith.addf %121, %120 : vector<8x128xf32>
    %123 = arith.divf %121, %122 : vector<8x128xf32>
    %cst_25 = arith.constant 2.000000e+00 : f32
    %124 = vector.broadcast %cst_25 : f32 to vector<8x128xf32>
    %125 = arith.mulf %124, %123 : vector<8x128xf32>
    %cst_26 = arith.constant 1.000000e+00 : f32
    %126 = vector.broadcast %cst_26 : f32 to vector<8x128xf32>
    %127 = arith.subf %125, %126 : vector<8x128xf32>
    %128 = arith.select %5, %127, %123 : vector<8x128xi1>, vector<8x128xf32>
    %129 = vector.extract_strided_slice %128 {offsets = [0, 0], sizes = [8, 32], strides = [1, 1]} : vector<8x128xf32> to vector<8x32xf32>
    %130 = vector.extract_strided_slice %128 {offsets = [0, 32], sizes = [8, 32], strides = [1, 1]} : vector<8x128xf32> to vector<8x32xf32>
    %131 = vector.extract_strided_slice %128 {offsets = [0, 64], sizes = [8, 32], strides = [1, 1]} : vector<8x128xf32> to vector<8x32xf32>
    %132 = vector.extract_strided_slice %128 {offsets = [0, 96], sizes = [8, 32], strides = [1, 1]} : vector<8x128xf32> to vector<8x32xf32>
    %133 = arith.mulf %130, %110 : vector<8x32xf32>
    %134 = arith.mulf %129, %131 : vector<8x32xf32>
    %135 = arith.addf %133, %134 : vector<8x32xf32>
    %136 = math.tanh %135 : vector<8x32xf32>
    %137 = arith.mulf %132, %136 : vector<8x32xf32>
    %138 = vector.extract_strided_slice %9 {offsets = [24, 0], sizes = [8, 1], strides = [1, 1]} : vector<64x1xf32> to vector<8x1xf32>
    %cst_27 = arith.constant 5.000000e-01 : f32
    %139 = vector.broadcast %cst_27 : f32 to vector<8x1xf32>
    %140 = arith.cmpf ogt, %138, %139 : vector<8x1xf32>
    %141 = vector.shape_cast %140 : vector<8x1xi1> to vector<8x1xi1>
    %142 = vector.broadcast %141 : vector<8x1xi1> to vector<8x32xi1>
    %143 = arith.select %142, %135, %110 : vector<8x32xi1>, vector<8x32xf32>
    %144 = vector.shape_cast %140 : vector<8x1xi1> to vector<8x1xi1>
    %145 = vector.broadcast %144 : vector<8x1xi1> to vector<8x32xi1>
    %146 = arith.select %145, %137, %113 : vector<8x32xi1>, vector<8x32xf32>
    %147 = vector.extract_strided_slice %11 {offsets = [32, 0], sizes = [8, 128], strides = [1, 1]} : vector<64x128xf32> to vector<8x128xf32>
    %148 = arith.truncf %146 : vector<8x32xf32> to vector<8x32xbf16>
    %cst_28 = arith.constant dense<0.000000e+00> : vector<8x128xf32>
    %149 = tpu.matmul %148, %12, %cst_28 {dimension_numbers = #tpu.dot_dimension_numbers<[1], [0], [0], [1], [0, 0, 1, 1], [], []>} : vector<8x32xbf16>, vector<32x128xbf16>, vector<8x128xf32> -> vector<8x128xf32>
    %150 = arith.addf %147, %149 : vector<8x128xf32>
    %151 = arith.mulf %150, %8 : vector<8x128xf32>
    %152 = arith.negf %151 : vector<8x128xf32>
    %153 = math.exp %152 : vector<8x128xf32>
    %cst_29 = arith.constant 1.000000e+00 : f32
    %154 = vector.broadcast %cst_29 : f32 to vector<8x128xf32>
    %155 = arith.addf %154, %153 : vector<8x128xf32>
    %156 = arith.divf %154, %155 : vector<8x128xf32>
    %cst_30 = arith.constant 2.000000e+00 : f32
    %157 = vector.broadcast %cst_30 : f32 to vector<8x128xf32>
    %158 = arith.mulf %157, %156 : vector<8x128xf32>
    %cst_31 = arith.constant 1.000000e+00 : f32
    %159 = vector.broadcast %cst_31 : f32 to vector<8x128xf32>
    %160 = arith.subf %158, %159 : vector<8x128xf32>
    %161 = arith.select %5, %160, %156 : vector<8x128xi1>, vector<8x128xf32>
    %162 = vector.extract_strided_slice %161 {offsets = [0, 0], sizes = [8, 32], strides = [1, 1]} : vector<8x128xf32> to vector<8x32xf32>
    %163 = vector.extract_strided_slice %161 {offsets = [0, 32], sizes = [8, 32], strides = [1, 1]} : vector<8x128xf32> to vector<8x32xf32>
    %164 = vector.extract_strided_slice %161 {offsets = [0, 64], sizes = [8, 32], strides = [1, 1]} : vector<8x128xf32> to vector<8x32xf32>
    %165 = vector.extract_strided_slice %161 {offsets = [0, 96], sizes = [8, 32], strides = [1, 1]} : vector<8x128xf32> to vector<8x32xf32>
    %166 = arith.mulf %163, %143 : vector<8x32xf32>
    %167 = arith.mulf %162, %164 : vector<8x32xf32>
    %168 = arith.addf %166, %167 : vector<8x32xf32>
    %169 = math.tanh %168 : vector<8x32xf32>
    %170 = arith.mulf %165, %169 : vector<8x32xf32>
    %171 = vector.extract_strided_slice %9 {offsets = [32, 0], sizes = [8, 1], strides = [1, 1]} : vector<64x1xf32> to vector<8x1xf32>
    %cst_32 = arith.constant 5.000000e-01 : f32
    %172 = vector.broadcast %cst_32 : f32 to vector<8x1xf32>
    %173 = arith.cmpf ogt, %171, %172 : vector<8x1xf32>
    %174 = vector.shape_cast %173 : vector<8x1xi1> to vector<8x1xi1>
    %175 = vector.broadcast %174 : vector<8x1xi1> to vector<8x32xi1>
    %176 = arith.select %175, %168, %143 : vector<8x32xi1>, vector<8x32xf32>
    %177 = vector.shape_cast %173 : vector<8x1xi1> to vector<8x1xi1>
    %178 = vector.broadcast %177 : vector<8x1xi1> to vector<8x32xi1>
    %179 = arith.select %178, %170, %146 : vector<8x32xi1>, vector<8x32xf32>
    %180 = vector.extract_strided_slice %11 {offsets = [40, 0], sizes = [8, 128], strides = [1, 1]} : vector<64x128xf32> to vector<8x128xf32>
    %181 = arith.truncf %179 : vector<8x32xf32> to vector<8x32xbf16>
    %cst_33 = arith.constant dense<0.000000e+00> : vector<8x128xf32>
    %182 = tpu.matmul %181, %12, %cst_33 {dimension_numbers = #tpu.dot_dimension_numbers<[1], [0], [0], [1], [0, 0, 1, 1], [], []>} : vector<8x32xbf16>, vector<32x128xbf16>, vector<8x128xf32> -> vector<8x128xf32>
    %183 = arith.addf %180, %182 : vector<8x128xf32>
    %184 = arith.mulf %183, %8 : vector<8x128xf32>
    %185 = arith.negf %184 : vector<8x128xf32>
    %186 = math.exp %185 : vector<8x128xf32>
    %cst_34 = arith.constant 1.000000e+00 : f32
    %187 = vector.broadcast %cst_34 : f32 to vector<8x128xf32>
    %188 = arith.addf %187, %186 : vector<8x128xf32>
    %189 = arith.divf %187, %188 : vector<8x128xf32>
    %cst_35 = arith.constant 2.000000e+00 : f32
    %190 = vector.broadcast %cst_35 : f32 to vector<8x128xf32>
    %191 = arith.mulf %190, %189 : vector<8x128xf32>
    %cst_36 = arith.constant 1.000000e+00 : f32
    %192 = vector.broadcast %cst_36 : f32 to vector<8x128xf32>
    %193 = arith.subf %191, %192 : vector<8x128xf32>
    %194 = arith.select %5, %193, %189 : vector<8x128xi1>, vector<8x128xf32>
    %195 = vector.extract_strided_slice %194 {offsets = [0, 0], sizes = [8, 32], strides = [1, 1]} : vector<8x128xf32> to vector<8x32xf32>
    %196 = vector.extract_strided_slice %194 {offsets = [0, 32], sizes = [8, 32], strides = [1, 1]} : vector<8x128xf32> to vector<8x32xf32>
    %197 = vector.extract_strided_slice %194 {offsets = [0, 64], sizes = [8, 32], strides = [1, 1]} : vector<8x128xf32> to vector<8x32xf32>
    %198 = vector.extract_strided_slice %194 {offsets = [0, 96], sizes = [8, 32], strides = [1, 1]} : vector<8x128xf32> to vector<8x32xf32>
    %199 = arith.mulf %196, %176 : vector<8x32xf32>
    %200 = arith.mulf %195, %197 : vector<8x32xf32>
    %201 = arith.addf %199, %200 : vector<8x32xf32>
    %202 = math.tanh %201 : vector<8x32xf32>
    %203 = arith.mulf %198, %202 : vector<8x32xf32>
    %204 = vector.extract_strided_slice %9 {offsets = [40, 0], sizes = [8, 1], strides = [1, 1]} : vector<64x1xf32> to vector<8x1xf32>
    %cst_37 = arith.constant 5.000000e-01 : f32
    %205 = vector.broadcast %cst_37 : f32 to vector<8x1xf32>
    %206 = arith.cmpf ogt, %204, %205 : vector<8x1xf32>
    %207 = vector.shape_cast %206 : vector<8x1xi1> to vector<8x1xi1>
    %208 = vector.broadcast %207 : vector<8x1xi1> to vector<8x32xi1>
    %209 = arith.select %208, %201, %176 : vector<8x32xi1>, vector<8x32xf32>
    %210 = vector.shape_cast %206 : vector<8x1xi1> to vector<8x1xi1>
    %211 = vector.broadcast %210 : vector<8x1xi1> to vector<8x32xi1>
    %212 = arith.select %211, %203, %179 : vector<8x32xi1>, vector<8x32xf32>
    %213 = vector.extract_strided_slice %11 {offsets = [48, 0], sizes = [8, 128], strides = [1, 1]} : vector<64x128xf32> to vector<8x128xf32>
    %214 = arith.truncf %212 : vector<8x32xf32> to vector<8x32xbf16>
    %cst_38 = arith.constant dense<0.000000e+00> : vector<8x128xf32>
    %215 = tpu.matmul %214, %12, %cst_38 {dimension_numbers = #tpu.dot_dimension_numbers<[1], [0], [0], [1], [0, 0, 1, 1], [], []>} : vector<8x32xbf16>, vector<32x128xbf16>, vector<8x128xf32> -> vector<8x128xf32>
    %216 = arith.addf %213, %215 : vector<8x128xf32>
    %217 = arith.mulf %216, %8 : vector<8x128xf32>
    %218 = arith.negf %217 : vector<8x128xf32>
    %219 = math.exp %218 : vector<8x128xf32>
    %cst_39 = arith.constant 1.000000e+00 : f32
    %220 = vector.broadcast %cst_39 : f32 to vector<8x128xf32>
    %221 = arith.addf %220, %219 : vector<8x128xf32>
    %222 = arith.divf %220, %221 : vector<8x128xf32>
    %cst_40 = arith.constant 2.000000e+00 : f32
    %223 = vector.broadcast %cst_40 : f32 to vector<8x128xf32>
    %224 = arith.mulf %223, %222 : vector<8x128xf32>
    %cst_41 = arith.constant 1.000000e+00 : f32
    %225 = vector.broadcast %cst_41 : f32 to vector<8x128xf32>
    %226 = arith.subf %224, %225 : vector<8x128xf32>
    %227 = arith.select %5, %226, %222 : vector<8x128xi1>, vector<8x128xf32>
    %228 = vector.extract_strided_slice %227 {offsets = [0, 0], sizes = [8, 32], strides = [1, 1]} : vector<8x128xf32> to vector<8x32xf32>
    %229 = vector.extract_strided_slice %227 {offsets = [0, 32], sizes = [8, 32], strides = [1, 1]} : vector<8x128xf32> to vector<8x32xf32>
    %230 = vector.extract_strided_slice %227 {offsets = [0, 64], sizes = [8, 32], strides = [1, 1]} : vector<8x128xf32> to vector<8x32xf32>
    %231 = vector.extract_strided_slice %227 {offsets = [0, 96], sizes = [8, 32], strides = [1, 1]} : vector<8x128xf32> to vector<8x32xf32>
    %232 = arith.mulf %229, %209 : vector<8x32xf32>
    %233 = arith.mulf %228, %230 : vector<8x32xf32>
    %234 = arith.addf %232, %233 : vector<8x32xf32>
    %235 = math.tanh %234 : vector<8x32xf32>
    %236 = arith.mulf %231, %235 : vector<8x32xf32>
    %237 = vector.extract_strided_slice %9 {offsets = [48, 0], sizes = [8, 1], strides = [1, 1]} : vector<64x1xf32> to vector<8x1xf32>
    %cst_42 = arith.constant 5.000000e-01 : f32
    %238 = vector.broadcast %cst_42 : f32 to vector<8x1xf32>
    %239 = arith.cmpf ogt, %237, %238 : vector<8x1xf32>
    %240 = vector.shape_cast %239 : vector<8x1xi1> to vector<8x1xi1>
    %241 = vector.broadcast %240 : vector<8x1xi1> to vector<8x32xi1>
    %242 = arith.select %241, %234, %209 : vector<8x32xi1>, vector<8x32xf32>
    %243 = vector.shape_cast %239 : vector<8x1xi1> to vector<8x1xi1>
    %244 = vector.broadcast %243 : vector<8x1xi1> to vector<8x32xi1>
    %245 = arith.select %244, %236, %212 : vector<8x32xi1>, vector<8x32xf32>
    %246 = vector.extract_strided_slice %11 {offsets = [56, 0], sizes = [8, 128], strides = [1, 1]} : vector<64x128xf32> to vector<8x128xf32>
    %247 = arith.truncf %245 : vector<8x32xf32> to vector<8x32xbf16>
    %cst_43 = arith.constant dense<0.000000e+00> : vector<8x128xf32>
    %248 = tpu.matmul %247, %12, %cst_43 {dimension_numbers = #tpu.dot_dimension_numbers<[1], [0], [0], [1], [0, 0, 1, 1], [], []>} : vector<8x32xbf16>, vector<32x128xbf16>, vector<8x128xf32> -> vector<8x128xf32>
    %249 = arith.addf %246, %248 : vector<8x128xf32>
    %250 = arith.mulf %249, %8 : vector<8x128xf32>
    %251 = arith.negf %250 : vector<8x128xf32>
    %252 = math.exp %251 : vector<8x128xf32>
    %cst_44 = arith.constant 1.000000e+00 : f32
    %253 = vector.broadcast %cst_44 : f32 to vector<8x128xf32>
    %254 = arith.addf %253, %252 : vector<8x128xf32>
    %255 = arith.divf %253, %254 : vector<8x128xf32>
    %cst_45 = arith.constant 2.000000e+00 : f32
    %256 = vector.broadcast %cst_45 : f32 to vector<8x128xf32>
    %257 = arith.mulf %256, %255 : vector<8x128xf32>
    %cst_46 = arith.constant 1.000000e+00 : f32
    %258 = vector.broadcast %cst_46 : f32 to vector<8x128xf32>
    %259 = arith.subf %257, %258 : vector<8x128xf32>
    %260 = arith.select %5, %259, %255 : vector<8x128xi1>, vector<8x128xf32>
    %261 = vector.extract_strided_slice %260 {offsets = [0, 0], sizes = [8, 32], strides = [1, 1]} : vector<8x128xf32> to vector<8x32xf32>
    %262 = vector.extract_strided_slice %260 {offsets = [0, 32], sizes = [8, 32], strides = [1, 1]} : vector<8x128xf32> to vector<8x32xf32>
    %263 = vector.extract_strided_slice %260 {offsets = [0, 64], sizes = [8, 32], strides = [1, 1]} : vector<8x128xf32> to vector<8x32xf32>
    %264 = vector.extract_strided_slice %260 {offsets = [0, 96], sizes = [8, 32], strides = [1, 1]} : vector<8x128xf32> to vector<8x32xf32>
    %265 = arith.mulf %262, %242 : vector<8x32xf32>
    %266 = arith.mulf %261, %263 : vector<8x32xf32>
    %267 = arith.addf %265, %266 : vector<8x32xf32>
    %268 = math.tanh %267 : vector<8x32xf32>
    %269 = arith.mulf %264, %268 : vector<8x32xf32>
    %270 = vector.extract_strided_slice %9 {offsets = [56, 0], sizes = [8, 1], strides = [1, 1]} : vector<64x1xf32> to vector<8x1xf32>
    %cst_47 = arith.constant 5.000000e-01 : f32
    %271 = vector.broadcast %cst_47 : f32 to vector<8x1xf32>
    %272 = arith.cmpf ogt, %270, %271 : vector<8x1xf32>
    %273 = vector.shape_cast %272 : vector<8x1xi1> to vector<8x1xi1>
    %274 = vector.broadcast %273 : vector<8x1xi1> to vector<8x32xi1>
    %275 = arith.select %274, %269, %245 : vector<8x32xi1>, vector<8x32xf32>
    %276 = tpu.concatenate %47, %80, %113, %146, %179, %212, %245, %275 in 0 : vector<8x32xf32>, vector<8x32xf32>, vector<8x32xf32>, vector<8x32xf32>, vector<8x32xf32>, vector<8x32xf32>, vector<8x32xf32>, vector<8x32xf32> -> vector<64x32xf32>
    %277 = arith.truncf %276 : vector<64x32xf32> to vector<64x32xbf16>
    %c0_48 = arith.constant 0 : index
    %c0_49 = arith.constant 0 : index
    %278 = vector.load %arg2[%c0_48, %c0_49] : memref<32x128xbf16, #tpu.memory_space<vmem>>, vector<32x128xbf16>
    %cst_50 = arith.constant dense<0.000000e+00> : vector<64x128xf32>
    %279 = tpu.matmul %277, %278, %cst_50 {dimension_numbers = #tpu.dot_dimension_numbers<[1], [0], [0], [1], [0, 0, 1, 1], [], []>} : vector<64x32xbf16>, vector<32x128xbf16>, vector<64x128xf32> -> vector<64x128xf32>
    %c0_51 = arith.constant 0 : index
    %c0_52 = arith.constant 0 : index
    %280 = vector.load %arg3[%c0_51, %c0_52] : memref<1x128xf32, #tpu.memory_space<vmem>>, vector<1x128xf32>
    %281 = vector.broadcast %280 : vector<1x128xf32> to vector<64x128xf32>
    %282 = arith.addf %279, %281 : vector<64x128xf32>
    %c0_53 = arith.constant 0 : index
    %c0_54 = arith.constant 0 : index
    %283 = vector.load %arg5[%c0_53, %c0_54] : memref<32x128xbf16, #tpu.memory_space<vmem>>, vector<32x128xbf16>
    %cst_55 = arith.constant 0.000000e+00 : f32
    %284 = vector.broadcast %cst_55 : f32 to vector<8x32xf32>
    %cst_56 = arith.constant 0.000000e+00 : f32
    %285 = vector.broadcast %cst_56 : f32 to vector<8x32xf32>
    %286 = vector.extract_strided_slice %282 {offsets = [0, 0], sizes = [8, 128], strides = [1, 1]} : vector<64x128xf32> to vector<8x128xf32>
    %287 = arith.truncf %284 : vector<8x32xf32> to vector<8x32xbf16>
    %cst_57 = arith.constant dense<0.000000e+00> : vector<8x128xf32>
    %288 = tpu.matmul %287, %283, %cst_57 {dimension_numbers = #tpu.dot_dimension_numbers<[1], [0], [0], [1], [0, 0, 1, 1], [], []>} : vector<8x32xbf16>, vector<32x128xbf16>, vector<8x128xf32> -> vector<8x128xf32>
    %289 = arith.addf %286, %288 : vector<8x128xf32>
    %290 = arith.mulf %289, %8 : vector<8x128xf32>
    %291 = arith.negf %290 : vector<8x128xf32>
    %292 = math.exp %291 : vector<8x128xf32>
    %cst_58 = arith.constant 1.000000e+00 : f32
    %293 = vector.broadcast %cst_58 : f32 to vector<8x128xf32>
    %294 = arith.addf %293, %292 : vector<8x128xf32>
    %295 = arith.divf %293, %294 : vector<8x128xf32>
    %cst_59 = arith.constant 2.000000e+00 : f32
    %296 = vector.broadcast %cst_59 : f32 to vector<8x128xf32>
    %297 = arith.mulf %296, %295 : vector<8x128xf32>
    %cst_60 = arith.constant 1.000000e+00 : f32
    %298 = vector.broadcast %cst_60 : f32 to vector<8x128xf32>
    %299 = arith.subf %297, %298 : vector<8x128xf32>
    %300 = arith.select %5, %299, %295 : vector<8x128xi1>, vector<8x128xf32>
    %301 = vector.extract_strided_slice %300 {offsets = [0, 0], sizes = [8, 32], strides = [1, 1]} : vector<8x128xf32> to vector<8x32xf32>
    %302 = vector.extract_strided_slice %300 {offsets = [0, 32], sizes = [8, 32], strides = [1, 1]} : vector<8x128xf32> to vector<8x32xf32>
    %303 = vector.extract_strided_slice %300 {offsets = [0, 64], sizes = [8, 32], strides = [1, 1]} : vector<8x128xf32> to vector<8x32xf32>
    %304 = vector.extract_strided_slice %300 {offsets = [0, 96], sizes = [8, 32], strides = [1, 1]} : vector<8x128xf32> to vector<8x32xf32>
    %305 = arith.mulf %302, %285 : vector<8x32xf32>
    %306 = arith.mulf %301, %303 : vector<8x32xf32>
    %307 = arith.addf %305, %306 : vector<8x32xf32>
    %308 = math.tanh %307 : vector<8x32xf32>
    %309 = arith.mulf %304, %308 : vector<8x32xf32>
    %310 = vector.extract_strided_slice %9 {offsets = [0, 0], sizes = [8, 1], strides = [1, 1]} : vector<64x1xf32> to vector<8x1xf32>
    %cst_61 = arith.constant 5.000000e-01 : f32
    %311 = vector.broadcast %cst_61 : f32 to vector<8x1xf32>
    %312 = arith.cmpf ogt, %310, %311 : vector<8x1xf32>
    %313 = vector.shape_cast %312 : vector<8x1xi1> to vector<8x1xi1>
    %314 = vector.broadcast %313 : vector<8x1xi1> to vector<8x32xi1>
    %315 = arith.select %314, %307, %285 : vector<8x32xi1>, vector<8x32xf32>
    %316 = vector.shape_cast %312 : vector<8x1xi1> to vector<8x1xi1>
    %317 = vector.broadcast %316 : vector<8x1xi1> to vector<8x32xi1>
    %318 = arith.select %317, %309, %284 : vector<8x32xi1>, vector<8x32xf32>
    %319 = vector.extract_strided_slice %282 {offsets = [8, 0], sizes = [8, 128], strides = [1, 1]} : vector<64x128xf32> to vector<8x128xf32>
    %320 = arith.truncf %318 : vector<8x32xf32> to vector<8x32xbf16>
    %cst_62 = arith.constant dense<0.000000e+00> : vector<8x128xf32>
    %321 = tpu.matmul %320, %283, %cst_62 {dimension_numbers = #tpu.dot_dimension_numbers<[1], [0], [0], [1], [0, 0, 1, 1], [], []>} : vector<8x32xbf16>, vector<32x128xbf16>, vector<8x128xf32> -> vector<8x128xf32>
    %322 = arith.addf %319, %321 : vector<8x128xf32>
    %323 = arith.mulf %322, %8 : vector<8x128xf32>
    %324 = arith.negf %323 : vector<8x128xf32>
    %325 = math.exp %324 : vector<8x128xf32>
    %cst_63 = arith.constant 1.000000e+00 : f32
    %326 = vector.broadcast %cst_63 : f32 to vector<8x128xf32>
    %327 = arith.addf %326, %325 : vector<8x128xf32>
    %328 = arith.divf %326, %327 : vector<8x128xf32>
    %cst_64 = arith.constant 2.000000e+00 : f32
    %329 = vector.broadcast %cst_64 : f32 to vector<8x128xf32>
    %330 = arith.mulf %329, %328 : vector<8x128xf32>
    %cst_65 = arith.constant 1.000000e+00 : f32
    %331 = vector.broadcast %cst_65 : f32 to vector<8x128xf32>
    %332 = arith.subf %330, %331 : vector<8x128xf32>
    %333 = arith.select %5, %332, %328 : vector<8x128xi1>, vector<8x128xf32>
    %334 = vector.extract_strided_slice %333 {offsets = [0, 0], sizes = [8, 32], strides = [1, 1]} : vector<8x128xf32> to vector<8x32xf32>
    %335 = vector.extract_strided_slice %333 {offsets = [0, 32], sizes = [8, 32], strides = [1, 1]} : vector<8x128xf32> to vector<8x32xf32>
    %336 = vector.extract_strided_slice %333 {offsets = [0, 64], sizes = [8, 32], strides = [1, 1]} : vector<8x128xf32> to vector<8x32xf32>
    %337 = vector.extract_strided_slice %333 {offsets = [0, 96], sizes = [8, 32], strides = [1, 1]} : vector<8x128xf32> to vector<8x32xf32>
    %338 = arith.mulf %335, %315 : vector<8x32xf32>
    %339 = arith.mulf %334, %336 : vector<8x32xf32>
    %340 = arith.addf %338, %339 : vector<8x32xf32>
    %341 = math.tanh %340 : vector<8x32xf32>
    %342 = arith.mulf %337, %341 : vector<8x32xf32>
    %343 = vector.extract_strided_slice %9 {offsets = [8, 0], sizes = [8, 1], strides = [1, 1]} : vector<64x1xf32> to vector<8x1xf32>
    %cst_66 = arith.constant 5.000000e-01 : f32
    %344 = vector.broadcast %cst_66 : f32 to vector<8x1xf32>
    %345 = arith.cmpf ogt, %343, %344 : vector<8x1xf32>
    %346 = vector.shape_cast %345 : vector<8x1xi1> to vector<8x1xi1>
    %347 = vector.broadcast %346 : vector<8x1xi1> to vector<8x32xi1>
    %348 = arith.select %347, %340, %315 : vector<8x32xi1>, vector<8x32xf32>
    %349 = vector.shape_cast %345 : vector<8x1xi1> to vector<8x1xi1>
    %350 = vector.broadcast %349 : vector<8x1xi1> to vector<8x32xi1>
    %351 = arith.select %350, %342, %318 : vector<8x32xi1>, vector<8x32xf32>
    %352 = vector.extract_strided_slice %282 {offsets = [16, 0], sizes = [8, 128], strides = [1, 1]} : vector<64x128xf32> to vector<8x128xf32>
    %353 = arith.truncf %351 : vector<8x32xf32> to vector<8x32xbf16>
    %cst_67 = arith.constant dense<0.000000e+00> : vector<8x128xf32>
    %354 = tpu.matmul %353, %283, %cst_67 {dimension_numbers = #tpu.dot_dimension_numbers<[1], [0], [0], [1], [0, 0, 1, 1], [], []>} : vector<8x32xbf16>, vector<32x128xbf16>, vector<8x128xf32> -> vector<8x128xf32>
    %355 = arith.addf %352, %354 : vector<8x128xf32>
    %356 = arith.mulf %355, %8 : vector<8x128xf32>
    %357 = arith.negf %356 : vector<8x128xf32>
    %358 = math.exp %357 : vector<8x128xf32>
    %cst_68 = arith.constant 1.000000e+00 : f32
    %359 = vector.broadcast %cst_68 : f32 to vector<8x128xf32>
    %360 = arith.addf %359, %358 : vector<8x128xf32>
    %361 = arith.divf %359, %360 : vector<8x128xf32>
    %cst_69 = arith.constant 2.000000e+00 : f32
    %362 = vector.broadcast %cst_69 : f32 to vector<8x128xf32>
    %363 = arith.mulf %362, %361 : vector<8x128xf32>
    %cst_70 = arith.constant 1.000000e+00 : f32
    %364 = vector.broadcast %cst_70 : f32 to vector<8x128xf32>
    %365 = arith.subf %363, %364 : vector<8x128xf32>
    %366 = arith.select %5, %365, %361 : vector<8x128xi1>, vector<8x128xf32>
    %367 = vector.extract_strided_slice %366 {offsets = [0, 0], sizes = [8, 32], strides = [1, 1]} : vector<8x128xf32> to vector<8x32xf32>
    %368 = vector.extract_strided_slice %366 {offsets = [0, 32], sizes = [8, 32], strides = [1, 1]} : vector<8x128xf32> to vector<8x32xf32>
    %369 = vector.extract_strided_slice %366 {offsets = [0, 64], sizes = [8, 32], strides = [1, 1]} : vector<8x128xf32> to vector<8x32xf32>
    %370 = vector.extract_strided_slice %366 {offsets = [0, 96], sizes = [8, 32], strides = [1, 1]} : vector<8x128xf32> to vector<8x32xf32>
    %371 = arith.mulf %368, %348 : vector<8x32xf32>
    %372 = arith.mulf %367, %369 : vector<8x32xf32>
    %373 = arith.addf %371, %372 : vector<8x32xf32>
    %374 = math.tanh %373 : vector<8x32xf32>
    %375 = arith.mulf %370, %374 : vector<8x32xf32>
    %376 = vector.extract_strided_slice %9 {offsets = [16, 0], sizes = [8, 1], strides = [1, 1]} : vector<64x1xf32> to vector<8x1xf32>
    %cst_71 = arith.constant 5.000000e-01 : f32
    %377 = vector.broadcast %cst_71 : f32 to vector<8x1xf32>
    %378 = arith.cmpf ogt, %376, %377 : vector<8x1xf32>
    %379 = vector.shape_cast %378 : vector<8x1xi1> to vector<8x1xi1>
    %380 = vector.broadcast %379 : vector<8x1xi1> to vector<8x32xi1>
    %381 = arith.select %380, %373, %348 : vector<8x32xi1>, vector<8x32xf32>
    %382 = vector.shape_cast %378 : vector<8x1xi1> to vector<8x1xi1>
    %383 = vector.broadcast %382 : vector<8x1xi1> to vector<8x32xi1>
    %384 = arith.select %383, %375, %351 : vector<8x32xi1>, vector<8x32xf32>
    %385 = vector.extract_strided_slice %282 {offsets = [24, 0], sizes = [8, 128], strides = [1, 1]} : vector<64x128xf32> to vector<8x128xf32>
    %386 = arith.truncf %384 : vector<8x32xf32> to vector<8x32xbf16>
    %cst_72 = arith.constant dense<0.000000e+00> : vector<8x128xf32>
    %387 = tpu.matmul %386, %283, %cst_72 {dimension_numbers = #tpu.dot_dimension_numbers<[1], [0], [0], [1], [0, 0, 1, 1], [], []>} : vector<8x32xbf16>, vector<32x128xbf16>, vector<8x128xf32> -> vector<8x128xf32>
    %388 = arith.addf %385, %387 : vector<8x128xf32>
    %389 = arith.mulf %388, %8 : vector<8x128xf32>
    %390 = arith.negf %389 : vector<8x128xf32>
    %391 = math.exp %390 : vector<8x128xf32>
    %cst_73 = arith.constant 1.000000e+00 : f32
    %392 = vector.broadcast %cst_73 : f32 to vector<8x128xf32>
    %393 = arith.addf %392, %391 : vector<8x128xf32>
    %394 = arith.divf %392, %393 : vector<8x128xf32>
    %cst_74 = arith.constant 2.000000e+00 : f32
    %395 = vector.broadcast %cst_74 : f32 to vector<8x128xf32>
    %396 = arith.mulf %395, %394 : vector<8x128xf32>
    %cst_75 = arith.constant 1.000000e+00 : f32
    %397 = vector.broadcast %cst_75 : f32 to vector<8x128xf32>
    %398 = arith.subf %396, %397 : vector<8x128xf32>
    %399 = arith.select %5, %398, %394 : vector<8x128xi1>, vector<8x128xf32>
    %400 = vector.extract_strided_slice %399 {offsets = [0, 0], sizes = [8, 32], strides = [1, 1]} : vector<8x128xf32> to vector<8x32xf32>
    %401 = vector.extract_strided_slice %399 {offsets = [0, 32], sizes = [8, 32], strides = [1, 1]} : vector<8x128xf32> to vector<8x32xf32>
    %402 = vector.extract_strided_slice %399 {offsets = [0, 64], sizes = [8, 32], strides = [1, 1]} : vector<8x128xf32> to vector<8x32xf32>
    %403 = vector.extract_strided_slice %399 {offsets = [0, 96], sizes = [8, 32], strides = [1, 1]} : vector<8x128xf32> to vector<8x32xf32>
    %404 = arith.mulf %401, %381 : vector<8x32xf32>
    %405 = arith.mulf %400, %402 : vector<8x32xf32>
    %406 = arith.addf %404, %405 : vector<8x32xf32>
    %407 = math.tanh %406 : vector<8x32xf32>
    %408 = arith.mulf %403, %407 : vector<8x32xf32>
    %409 = vector.extract_strided_slice %9 {offsets = [24, 0], sizes = [8, 1], strides = [1, 1]} : vector<64x1xf32> to vector<8x1xf32>
    %cst_76 = arith.constant 5.000000e-01 : f32
    %410 = vector.broadcast %cst_76 : f32 to vector<8x1xf32>
    %411 = arith.cmpf ogt, %409, %410 : vector<8x1xf32>
    %412 = vector.shape_cast %411 : vector<8x1xi1> to vector<8x1xi1>
    %413 = vector.broadcast %412 : vector<8x1xi1> to vector<8x32xi1>
    %414 = arith.select %413, %406, %381 : vector<8x32xi1>, vector<8x32xf32>
    %415 = vector.shape_cast %411 : vector<8x1xi1> to vector<8x1xi1>
    %416 = vector.broadcast %415 : vector<8x1xi1> to vector<8x32xi1>
    %417 = arith.select %416, %408, %384 : vector<8x32xi1>, vector<8x32xf32>
    %418 = vector.extract_strided_slice %282 {offsets = [32, 0], sizes = [8, 128], strides = [1, 1]} : vector<64x128xf32> to vector<8x128xf32>
    %419 = arith.truncf %417 : vector<8x32xf32> to vector<8x32xbf16>
    %cst_77 = arith.constant dense<0.000000e+00> : vector<8x128xf32>
    %420 = tpu.matmul %419, %283, %cst_77 {dimension_numbers = #tpu.dot_dimension_numbers<[1], [0], [0], [1], [0, 0, 1, 1], [], []>} : vector<8x32xbf16>, vector<32x128xbf16>, vector<8x128xf32> -> vector<8x128xf32>
    %421 = arith.addf %418, %420 : vector<8x128xf32>
    %422 = arith.mulf %421, %8 : vector<8x128xf32>
    %423 = arith.negf %422 : vector<8x128xf32>
    %424 = math.exp %423 : vector<8x128xf32>
    %cst_78 = arith.constant 1.000000e+00 : f32
    %425 = vector.broadcast %cst_78 : f32 to vector<8x128xf32>
    %426 = arith.addf %425, %424 : vector<8x128xf32>
    %427 = arith.divf %425, %426 : vector<8x128xf32>
    %cst_79 = arith.constant 2.000000e+00 : f32
    %428 = vector.broadcast %cst_79 : f32 to vector<8x128xf32>
    %429 = arith.mulf %428, %427 : vector<8x128xf32>
    %cst_80 = arith.constant 1.000000e+00 : f32
    %430 = vector.broadcast %cst_80 : f32 to vector<8x128xf32>
    %431 = arith.subf %429, %430 : vector<8x128xf32>
    %432 = arith.select %5, %431, %427 : vector<8x128xi1>, vector<8x128xf32>
    %433 = vector.extract_strided_slice %432 {offsets = [0, 0], sizes = [8, 32], strides = [1, 1]} : vector<8x128xf32> to vector<8x32xf32>
    %434 = vector.extract_strided_slice %432 {offsets = [0, 32], sizes = [8, 32], strides = [1, 1]} : vector<8x128xf32> to vector<8x32xf32>
    %435 = vector.extract_strided_slice %432 {offsets = [0, 64], sizes = [8, 32], strides = [1, 1]} : vector<8x128xf32> to vector<8x32xf32>
    %436 = vector.extract_strided_slice %432 {offsets = [0, 96], sizes = [8, 32], strides = [1, 1]} : vector<8x128xf32> to vector<8x32xf32>
    %437 = arith.mulf %434, %414 : vector<8x32xf32>
    %438 = arith.mulf %433, %435 : vector<8x32xf32>
    %439 = arith.addf %437, %438 : vector<8x32xf32>
    %440 = math.tanh %439 : vector<8x32xf32>
    %441 = arith.mulf %436, %440 : vector<8x32xf32>
    %442 = vector.extract_strided_slice %9 {offsets = [32, 0], sizes = [8, 1], strides = [1, 1]} : vector<64x1xf32> to vector<8x1xf32>
    %cst_81 = arith.constant 5.000000e-01 : f32
    %443 = vector.broadcast %cst_81 : f32 to vector<8x1xf32>
    %444 = arith.cmpf ogt, %442, %443 : vector<8x1xf32>
    %445 = vector.shape_cast %444 : vector<8x1xi1> to vector<8x1xi1>
    %446 = vector.broadcast %445 : vector<8x1xi1> to vector<8x32xi1>
    %447 = arith.select %446, %439, %414 : vector<8x32xi1>, vector<8x32xf32>
    %448 = vector.shape_cast %444 : vector<8x1xi1> to vector<8x1xi1>
    %449 = vector.broadcast %448 : vector<8x1xi1> to vector<8x32xi1>
    %450 = arith.select %449, %441, %417 : vector<8x32xi1>, vector<8x32xf32>
    %451 = vector.extract_strided_slice %282 {offsets = [40, 0], sizes = [8, 128], strides = [1, 1]} : vector<64x128xf32> to vector<8x128xf32>
    %452 = arith.truncf %450 : vector<8x32xf32> to vector<8x32xbf16>
    %cst_82 = arith.constant dense<0.000000e+00> : vector<8x128xf32>
    %453 = tpu.matmul %452, %283, %cst_82 {dimension_numbers = #tpu.dot_dimension_numbers<[1], [0], [0], [1], [0, 0, 1, 1], [], []>} : vector<8x32xbf16>, vector<32x128xbf16>, vector<8x128xf32> -> vector<8x128xf32>
    %454 = arith.addf %451, %453 : vector<8x128xf32>
    %455 = arith.mulf %454, %8 : vector<8x128xf32>
    %456 = arith.negf %455 : vector<8x128xf32>
    %457 = math.exp %456 : vector<8x128xf32>
    %cst_83 = arith.constant 1.000000e+00 : f32
    %458 = vector.broadcast %cst_83 : f32 to vector<8x128xf32>
    %459 = arith.addf %458, %457 : vector<8x128xf32>
    %460 = arith.divf %458, %459 : vector<8x128xf32>
    %cst_84 = arith.constant 2.000000e+00 : f32
    %461 = vector.broadcast %cst_84 : f32 to vector<8x128xf32>
    %462 = arith.mulf %461, %460 : vector<8x128xf32>
    %cst_85 = arith.constant 1.000000e+00 : f32
    %463 = vector.broadcast %cst_85 : f32 to vector<8x128xf32>
    %464 = arith.subf %462, %463 : vector<8x128xf32>
    %465 = arith.select %5, %464, %460 : vector<8x128xi1>, vector<8x128xf32>
    %466 = vector.extract_strided_slice %465 {offsets = [0, 0], sizes = [8, 32], strides = [1, 1]} : vector<8x128xf32> to vector<8x32xf32>
    %467 = vector.extract_strided_slice %465 {offsets = [0, 32], sizes = [8, 32], strides = [1, 1]} : vector<8x128xf32> to vector<8x32xf32>
    %468 = vector.extract_strided_slice %465 {offsets = [0, 64], sizes = [8, 32], strides = [1, 1]} : vector<8x128xf32> to vector<8x32xf32>
    %469 = vector.extract_strided_slice %465 {offsets = [0, 96], sizes = [8, 32], strides = [1, 1]} : vector<8x128xf32> to vector<8x32xf32>
    %470 = arith.mulf %467, %447 : vector<8x32xf32>
    %471 = arith.mulf %466, %468 : vector<8x32xf32>
    %472 = arith.addf %470, %471 : vector<8x32xf32>
    %473 = math.tanh %472 : vector<8x32xf32>
    %474 = arith.mulf %469, %473 : vector<8x32xf32>
    %475 = vector.extract_strided_slice %9 {offsets = [40, 0], sizes = [8, 1], strides = [1, 1]} : vector<64x1xf32> to vector<8x1xf32>
    %cst_86 = arith.constant 5.000000e-01 : f32
    %476 = vector.broadcast %cst_86 : f32 to vector<8x1xf32>
    %477 = arith.cmpf ogt, %475, %476 : vector<8x1xf32>
    %478 = vector.shape_cast %477 : vector<8x1xi1> to vector<8x1xi1>
    %479 = vector.broadcast %478 : vector<8x1xi1> to vector<8x32xi1>
    %480 = arith.select %479, %472, %447 : vector<8x32xi1>, vector<8x32xf32>
    %481 = vector.shape_cast %477 : vector<8x1xi1> to vector<8x1xi1>
    %482 = vector.broadcast %481 : vector<8x1xi1> to vector<8x32xi1>
    %483 = arith.select %482, %474, %450 : vector<8x32xi1>, vector<8x32xf32>
    %484 = vector.extract_strided_slice %282 {offsets = [48, 0], sizes = [8, 128], strides = [1, 1]} : vector<64x128xf32> to vector<8x128xf32>
    %485 = arith.truncf %483 : vector<8x32xf32> to vector<8x32xbf16>
    %cst_87 = arith.constant dense<0.000000e+00> : vector<8x128xf32>
    %486 = tpu.matmul %485, %283, %cst_87 {dimension_numbers = #tpu.dot_dimension_numbers<[1], [0], [0], [1], [0, 0, 1, 1], [], []>} : vector<8x32xbf16>, vector<32x128xbf16>, vector<8x128xf32> -> vector<8x128xf32>
    %487 = arith.addf %484, %486 : vector<8x128xf32>
    %488 = arith.mulf %487, %8 : vector<8x128xf32>
    %489 = arith.negf %488 : vector<8x128xf32>
    %490 = math.exp %489 : vector<8x128xf32>
    %cst_88 = arith.constant 1.000000e+00 : f32
    %491 = vector.broadcast %cst_88 : f32 to vector<8x128xf32>
    %492 = arith.addf %491, %490 : vector<8x128xf32>
    %493 = arith.divf %491, %492 : vector<8x128xf32>
    %cst_89 = arith.constant 2.000000e+00 : f32
    %494 = vector.broadcast %cst_89 : f32 to vector<8x128xf32>
    %495 = arith.mulf %494, %493 : vector<8x128xf32>
    %cst_90 = arith.constant 1.000000e+00 : f32
    %496 = vector.broadcast %cst_90 : f32 to vector<8x128xf32>
    %497 = arith.subf %495, %496 : vector<8x128xf32>
    %498 = arith.select %5, %497, %493 : vector<8x128xi1>, vector<8x128xf32>
    %499 = vector.extract_strided_slice %498 {offsets = [0, 0], sizes = [8, 32], strides = [1, 1]} : vector<8x128xf32> to vector<8x32xf32>
    %500 = vector.extract_strided_slice %498 {offsets = [0, 32], sizes = [8, 32], strides = [1, 1]} : vector<8x128xf32> to vector<8x32xf32>
    %501 = vector.extract_strided_slice %498 {offsets = [0, 64], sizes = [8, 32], strides = [1, 1]} : vector<8x128xf32> to vector<8x32xf32>
    %502 = vector.extract_strided_slice %498 {offsets = [0, 96], sizes = [8, 32], strides = [1, 1]} : vector<8x128xf32> to vector<8x32xf32>
    %503 = arith.mulf %500, %480 : vector<8x32xf32>
    %504 = arith.mulf %499, %501 : vector<8x32xf32>
    %505 = arith.addf %503, %504 : vector<8x32xf32>
    %506 = math.tanh %505 : vector<8x32xf32>
    %507 = arith.mulf %502, %506 : vector<8x32xf32>
    %508 = vector.extract_strided_slice %9 {offsets = [48, 0], sizes = [8, 1], strides = [1, 1]} : vector<64x1xf32> to vector<8x1xf32>
    %cst_91 = arith.constant 5.000000e-01 : f32
    %509 = vector.broadcast %cst_91 : f32 to vector<8x1xf32>
    %510 = arith.cmpf ogt, %508, %509 : vector<8x1xf32>
    %511 = vector.shape_cast %510 : vector<8x1xi1> to vector<8x1xi1>
    %512 = vector.broadcast %511 : vector<8x1xi1> to vector<8x32xi1>
    %513 = arith.select %512, %505, %480 : vector<8x32xi1>, vector<8x32xf32>
    %514 = vector.shape_cast %510 : vector<8x1xi1> to vector<8x1xi1>
    %515 = vector.broadcast %514 : vector<8x1xi1> to vector<8x32xi1>
    %516 = arith.select %515, %507, %483 : vector<8x32xi1>, vector<8x32xf32>
    %517 = vector.extract_strided_slice %282 {offsets = [56, 0], sizes = [8, 128], strides = [1, 1]} : vector<64x128xf32> to vector<8x128xf32>
    %518 = arith.truncf %516 : vector<8x32xf32> to vector<8x32xbf16>
    %cst_92 = arith.constant dense<0.000000e+00> : vector<8x128xf32>
    %519 = tpu.matmul %518, %283, %cst_92 {dimension_numbers = #tpu.dot_dimension_numbers<[1], [0], [0], [1], [0, 0, 1, 1], [], []>} : vector<8x32xbf16>, vector<32x128xbf16>, vector<8x128xf32> -> vector<8x128xf32>
    %520 = arith.addf %517, %519 : vector<8x128xf32>
    %521 = arith.mulf %520, %8 : vector<8x128xf32>
    %522 = arith.negf %521 : vector<8x128xf32>
    %523 = math.exp %522 : vector<8x128xf32>
    %cst_93 = arith.constant 1.000000e+00 : f32
    %524 = vector.broadcast %cst_93 : f32 to vector<8x128xf32>
    %525 = arith.addf %524, %523 : vector<8x128xf32>
    %526 = arith.divf %524, %525 : vector<8x128xf32>
    %cst_94 = arith.constant 2.000000e+00 : f32
    %527 = vector.broadcast %cst_94 : f32 to vector<8x128xf32>
    %528 = arith.mulf %527, %526 : vector<8x128xf32>
    %cst_95 = arith.constant 1.000000e+00 : f32
    %529 = vector.broadcast %cst_95 : f32 to vector<8x128xf32>
    %530 = arith.subf %528, %529 : vector<8x128xf32>
    %531 = arith.select %5, %530, %526 : vector<8x128xi1>, vector<8x128xf32>
    %532 = vector.extract_strided_slice %531 {offsets = [0, 0], sizes = [8, 32], strides = [1, 1]} : vector<8x128xf32> to vector<8x32xf32>
    %533 = vector.extract_strided_slice %531 {offsets = [0, 32], sizes = [8, 32], strides = [1, 1]} : vector<8x128xf32> to vector<8x32xf32>
    %534 = vector.extract_strided_slice %531 {offsets = [0, 64], sizes = [8, 32], strides = [1, 1]} : vector<8x128xf32> to vector<8x32xf32>
    %535 = vector.extract_strided_slice %531 {offsets = [0, 96], sizes = [8, 32], strides = [1, 1]} : vector<8x128xf32> to vector<8x32xf32>
    %536 = arith.mulf %533, %513 : vector<8x32xf32>
    %537 = arith.mulf %532, %534 : vector<8x32xf32>
    %538 = arith.addf %536, %537 : vector<8x32xf32>
    %539 = math.tanh %538 : vector<8x32xf32>
    %540 = arith.mulf %535, %539 : vector<8x32xf32>
    %541 = vector.extract_strided_slice %9 {offsets = [56, 0], sizes = [8, 1], strides = [1, 1]} : vector<64x1xf32> to vector<8x1xf32>
    %cst_96 = arith.constant 5.000000e-01 : f32
    %542 = vector.broadcast %cst_96 : f32 to vector<8x1xf32>
    %543 = arith.cmpf ogt, %541, %542 : vector<8x1xf32>
    %544 = vector.shape_cast %543 : vector<8x1xi1> to vector<8x1xi1>
    %545 = vector.broadcast %544 : vector<8x1xi1> to vector<8x32xi1>
    %546 = arith.select %545, %540, %516 : vector<8x32xi1>, vector<8x32xf32>
    %c0_97 = arith.constant 0 : index
    %c0_98 = arith.constant 0 : index
    %547 = vector.load %arg6[%c0_97, %c0_98] : memref<8x32xf32, #tpu.memory_space<vmem>>, vector<8x32xf32>
    tpu.vector_store %arg6[%c0_97, %c0_98], %546 {strides = array<i32>} : memref<8x32xf32, #tpu.memory_space<vmem>>, vector<8x32xf32>,
    return
  }
}

</mosaic_0001>

<llo_original>
// kernel: lstm_network_forward.1
$region0: #{lstm_network_forward.1}
  #allocation0 [shape = 'u32[]', space=smem, size = 0x4, offset = 0x4, fixed_abs, tag = 'smem constant byte address 0x4 - core index']
  #allocation1 [shape = 'u32[144,128]{1,0:T(1,128)}', space=vmem, size = 0x12000, scoped, tag = 'internal scratch']
  %s0 = inlined_call_operand.vmem [shape: bf16[64,128], index: 0, kind: input, shape index: {}]
  %s1 = inlined_call_operand.vmem [shape: f32[64,1], index: 1, kind: input, shape index: {}]
  %s2 = inlined_call_operand.vmem [shape: bf16[32,128], index: 2, kind: input, shape index: {}]
  %s3 = inlined_call_operand.vmem [shape: f32[1,128], index: 3, kind: input, shape index: {}]
  %s4 = inlined_call_operand.vmem [shape: bf16[32,128], index: 4, kind: input, shape index: {}]
  %s5 = inlined_call_operand.vmem [shape: bf16[32,128], index: 5, kind: input, shape index: {}]
  %s6 = inlined_call_operand.vmem [shape: f32[8,32], index: 6, kind: output, shape index: {}]
  %s7 = sld [smem:[#allocation0]]
  $region34: #{lstm_network_forward.1} parent=0
    _
  %s9 = ssub.s32 1, %s7
  %s10 = scalar_select 0, %s9, %s7
  // Predicated region
  $region2: #{lstm_network_forward.1} parent=0 // pred_check
    _
  $region3: #{lstm_network_forward.1} parent=0 // pred_check_branch
    %12 = sbr.rel (0) target = $region5
  $region4: #{lstm_network_forward.1} parent=0 // pred_region
    _
  $region5: #{lstm_network_forward.1} parent=0 // pred_fallthru
    _
  // Predicated region
  $region6: #{lstm_network_forward.1} parent=0 // pred_check
    _
  $region7: #{lstm_network_forward.1} parent=0 // pred_check_branch
    %14 = sbr.rel (0) target = $region9
  $region8: #{lstm_network_forward.1} parent=0 // pred_region
    _
  $region9: #{lstm_network_forward.1} parent=0 // pred_fallthru
    _
  // Predicated region
  $region10: #{lstm_network_forward.1} parent=0 // pred_check
    _
  $region11: #{lstm_network_forward.1} parent=0 // pred_check_branch
    %16 = sbr.rel (0) target = $region13
  $region12: #{lstm_network_forward.1} parent=0 // pred_region
    _
  $region13: #{lstm_network_forward.1} parent=0 // pred_fallthru
    _
  // Predicated region
  $region14: #{lstm_network_forward.1} parent=0 // pred_check
    _
  $region15: #{lstm_network_forward.1} parent=0 // pred_check_branch
    %18 = sbr.rel (0) target = $region17
  $region16: #{lstm_network_forward.1} parent=0 // pred_region
    _
  $region17: #{lstm_network_forward.1} parent=0 // pred_fallthru
    _
  // Predicated region
  $region18: #{lstm_network_forward.1} parent=0 // pred_check
    _
  $region19: #{lstm_network_forward.1} parent=0 // pred_check_branch
    %20 = sbr.rel (0) target = $region21
  $region20: #{lstm_network_forward.1} parent=0 // pred_region
    _
  $region21: #{lstm_network_forward.1} parent=0 // pred_fallthru
    _
  // Predicated region
  $region22: #{lstm_network_forward.1} parent=0 // pred_check
    _
  $region23: #{lstm_network_forward.1} parent=0 // pred_check_branch
    %22 = sbr.rel (0) target = $region25
  $region24: #{lstm_network_forward.1} parent=0 // pred_region
    _
  $region25: #{lstm_network_forward.1} parent=0 // pred_fallthru
    _
  %v24 = vlaneseq
  %v25 = vand.u32 %v24, 127
  %vm26 = vcmp.ge.s32.totalorder %v25, 64
  %vm27 = vcmp.lt.s32.totalorder %v25, 96
  %vm28 = vmand %vm26, %vm27
  %v29 = vsel %vm28, 2.0, 1.0
  %v30 = vld [vmem:[%s1] sm:$0xff]
  %v31 = vld [vmem:[%s1 + $0x8] sm:$0xff]
  %v32 = vld [vmem:[%s1 + $0x10] sm:$0xff]
  %v33 = vld [vmem:[%s1 + $0x18] sm:$0xff]
  %v34 = vld [vmem:[%s1 + $0x20] sm:$0xff]
  %v35 = vld [vmem:[%s1 + $0x28] sm:$0xff]
  %v36 = vld [vmem:[%s1 + $0x30] sm:$0xff]
  %v37 = vld [vmem:[%s1 + $0x38] sm:$0xff]
  %v38 = vld [vmem:[%s0] sm:$0xf]
  %v39 = vld [vmem:[%s0 + $0x4] sm:$0xf]
  %v40 = vld [vmem:[%s0 + $0x8] sm:$0xf]
  %v41 = vld [vmem:[%s0 + $0xc] sm:$0xf]
  %v42 = vld [vmem:[%s0 + $0x10] sm:$0xf]
  %v43 = vld [vmem:[%s0 + $0x14] sm:$0xf]
  %v44 = vld [vmem:[%s0 + $0x18] sm:$0xf]
  %v45 = vld [vmem:[%s0 + $0x1c] sm:$0xf]
  %v46 = vunpack.c.l.bf16 %v38
  %v47 = vunpack.c.l.bf16 %v39
  %v48 = vunpack.c.l.bf16 %v40
  %v49 = vunpack.c.l.bf16 %v41
  %v50 = vunpack.c.l.bf16 %v42
  %v51 = vunpack.c.l.bf16 %v43
  %v52 = vunpack.c.l.bf16 %v44
  %v53 = vunpack.c.l.bf16 %v45
  %v54 = vld [vmem:[%s4] sm:$0xf]
  %v55 = vld [vmem:[%s4 + $0x4] sm:$0xf]
  %v56 = vld [vmem:[%s4 + $0x8] sm:$0xf]
  %v57 = vld [vmem:[%s4 + $0xc] sm:$0xf]
  %v62 = vunpack.c.l.b16 %v54
  %v63 = vunpack.c.l.b16 %v55
  %v64 = vunpack.c.l.b16 %v56
  %v65 = vunpack.c.l.b16 %v57
  %v66 = vpack.c.b16 %v63, %v62
  %v67 = vpack.c.b16 %v65, %v64
  %vm70 = vcmask 261120
  %v72 = vsel %vm70, 0, 0
  %74 = vmatprep.subr.bf16.mxu0 0
  %75 = vmatpush1.bf16.msra.mxu0 %v66
  %76 = vmatprep.subr.bf16.mxu0 0
  %77 = vmatpush1.bf16.msra.mxu0 %v67
  %78 = vmatprep.subr.bf16.mxu0 0
  %79 = vmatpush1.bf16.msra.mxu0 0
  %80 = vmatprep.subr.bf16.mxu0 0
  %81 = vmatpush1.bf16.msra.mxu0 0
  %82 = vmatprep.subr.bf16.mxu0 0
  %83 = vmatpush1.bf16.msra.mxu0 0
  %84 = vmatprep.subr.bf16.mxu0 0
  %85 = vmatpush1.bf16.msra.mxu0 0
  %86 = vmatprep.subr.bf16.mxu0 0
  %87 = vmatpush1.bf16.msra.mxu0 0
  %88 = vmatprep.subr.bf16.mxu0 0
  %89 = vmatpush1.bf16.msra.mxu0 0
  %90 = vmatprep.subr.bf16.mxu0 0
  %91 = vmatpush1.bf16.msra.mxu0 0
  %92 = vmatprep.subr.bf16.mxu0 0
  %93 = vmatpush1.bf16.msra.mxu0 0
  %94 = vmatprep.subr.bf16.mxu0 0
  %95 = vmatpush1.bf16.msra.mxu0 0
  %96 = vmatprep.subr.bf16.mxu0 0
  %97 = vmatpush1.bf16.msra.mxu0 0
  %98 = vmatprep.subr.bf16.mxu0 0
  %99 = vmatpush1.bf16.msra.mxu0 0
  %100 = vmatprep.subr.bf16.mxu0 0
  %101 = vmatpush1.bf16.msra.mxu0 0
  %102 = vmatprep.subr.bf16.mxu0 0
  %103 = vmatpush1.bf16.msra.mxu0 0
  %104 = vmatprep.subr.bf16.mxu0 0
  %105 = vmatpush1.bf16.msra.mxu0 0
  %106 = vmatprep.mubr.bf16.mxu0 0
  %107 = vmatmul.mubr.bf16.gmra.mrb[0].mxu0 %v72
  %v108 = vpop.f32.mrb[0].mxu0
  %v109 = vadd.f32 0.0, %v108
  %v110 = vpop.f32.mrb[0].mxu0
  %v111 = vpop.f32.mrb[0].mxu0
  %v112 = vpop.f32.mrb[0].mxu0
  %113 = vdwg.mxu0
  %v114 = vadd.f32 %v46, %v109
  %v115 = vmul.f32 %v114, %v29
  %v116 = vxor.u32 %v115, 2147483648
  %v117 = vmul.f32 %v116, 1.442695
  %v118 = vpow.pop %v117
  %v119 = vadd.f32 %v118, 1.0
  %v120 = vrcp.pop %v119
  %v121 = vmul.f32 1.0, %v120
  %v122 = vmul.f32 %v121, 2.0
  %v123 = vsub.f32 %v122, 1.0
  %v124 = vsel %vm28, %v123, %v121
  %v125 = vmul.f32 %v124, 0.0
  %127 = vrot.lane.b32.xlu0 %v124, 64
  %v128 = vpop.permute.xlu0 %127
  %v130 = vmul.f32 %v124, %v128
  %132 = vrot.lane.b32.xlu0 %v130, 32
  %v133 = vpop.permute.xlu0 %132
  %v135 = vadd.f32 %v125, %v133
  %v136 = vtanh.pop %v135
  %138 = vrot.lane.b32.xlu0 %v136, 64
  %v139 = vpop.permute.xlu0 %138
  %v141 = vmul.f32 %v124, %v139
  %vm142 = vcmp.gt.f32.partialorder %v30, 0.5
  %v143 = vsel %vm142, 1, 0
  %144 = vset.pattern.permute.xlu0 0
  %145 = vperm.xlu0 %144, %v143
  %v146 = vpop.permute.xlu0 %145
  %vm147 = vcmp.eq.s32.totalorder %v146, 1
  %v148 = vsel %vm147, %v135, 0.0
  %v149 = vsel %vm147, %v141, 0.0
  %v150 = vpack.c.bf16 %v149, %v149
  %152 = vrot.lane.b32.xlu0 %v150, 32
  %v153 = vpop.permute.xlu0 %152
  %v155 = vsel %vm70, %v153, 0
  %157 = vmatprep.subr.bf16.mxu0 0
  %158 = vmatpush1.bf16.msra.mxu0 %v66
  %159 = vmatprep.subr.bf16.mxu0 0
  %160 = vmatpush1.bf16.msra.mxu0 %v67
  %161 = vmatprep.subr.bf16.mxu0 0
  %162 = vmatpush1.bf16.msra.mxu0 0
  %163 = vmatprep.subr.bf16.mxu0 0
  %164 = vmatpush1.bf16.msra.mxu0 0
  %165 = vmatprep.subr.bf16.mxu0 0
  %166 = vmatpush1.bf16.msra.mxu0 0
  %167 = vmatprep.subr.bf16.mxu0 0
  %168 = vmatpush1.bf16.msra.mxu0 0
  %169 = vmatprep.subr.bf16.mxu0 0
  %170 = vmatpush1.bf16.msra.mxu0 0
  %171 = vmatprep.subr.bf16.mxu0 0
  %172 = vmatpush1.bf16.msra.mxu0 0
  %173 = vmatprep.subr.bf16.mxu0 0
  %174 = vmatpush1.bf16.msra.mxu0 0
  %175 = vmatprep.subr.bf16.mxu0 0
  %176 = vmatpush1.bf16.msra.mxu0 0
  %177 = vmatprep.subr.bf16.mxu0 0
  %178 = vmatpush1.bf16.msra.mxu0 0
  %179 = vmatprep.subr.bf16.mxu0 0
  %180 = vmatpush1.bf16.msra.mxu0 0
  %181 = vmatprep.subr.bf16.mxu0 0
  %182 = vmatpush1.bf16.msra.mxu0 0
  %183 = vmatprep.subr.bf16.mxu0 0
  %184 = vmatpush1.bf16.msra.mxu0 0
  %185 = vmatprep.subr.bf16.mxu0 0
  %186 = vmatpush1.bf16.msra.mxu0 0
  %187 = vmatprep.subr.bf16.mxu0 0
  %188 = vmatpush1.bf16.msra.mxu0 0
  %189 = vmatprep.mubr.bf16.mxu0 0
  %190 = vmatmul.mubr.bf16.gmra.mrb[0].mxu0 %v155
  %v191 = vpop.f32.mrb[0].mxu0
  %v192 = vadd.f32 0.0, %v191
  %v193 = vpop.f32.mrb[0].mxu0
  %v194 = vpop.f32.mrb[0].mxu0
  %v195 = vpop.f32.mrb[0].mxu0
  %196 = vdwg.mxu0
  %v197 = vadd.f32 %v47, %v192
  %v198 = vmul.f32 %v197, %v29
  %v199 = vxor.u32 %v198, 2147483648
  %v200 = vmul.f32 %v199, 1.442695
  %v201 = vpow.pop %v200
  %v202 = vadd.f32 %v201, 1.0
  %v203 = vrcp.pop %v202
  %v204 = vmul.f32 1.0, %v203
  %v205 = vmul.f32 %v204, 2.0
  %v206 = vsub.f32 %v205, 1.0
  %v207 = vsel %vm28, %v206, %v204
  %v208 = vmul.f32 %v207, %v148
  %210 = vrot.lane.b32.xlu0 %v207, 64
  %v211 = vpop.permute.xlu0 %210
  %v213 = vmul.f32 %v207, %v211
  %215 = vrot.lane.b32.xlu0 %v213, 32
  %v216 = vpop.permute.xlu0 %215
  %v218 = vadd.f32 %v208, %v216
  %v219 = vtanh.pop %v218
  %221 = vrot.lane.b32.xlu0 %v219, 64
  %v222 = vpop.permute.xlu0 %221
  %v224 = vmul.f32 %v207, %v222
  %vm225 = vcmp.gt.f32.partialorder %v31, 0.5
  %v226 = vsel %vm225, 1, 0
  %227 = vset.pattern.permute.xlu0 0
  %228 = vperm.xlu0 %227, %v226
  %v229 = vpop.permute.xlu0 %228
  %vm230 = vcmp.eq.s32.totalorder %v229, 1
  %v231 = vsel %vm230, %v218, %v148
  %v232 = vsel %vm230, %v224, %v149
  %v233 = vpack.c.bf16 %v232, %v232
  %235 = vrot.lane.b32.xlu0 %v233, 32
  %v236 = vpop.permute.xlu0 %235
  %v238 = vsel %vm70, %v236, 0
  %240 = vmatprep.subr.bf16.mxu0 0
  %241 = vmatpush1.bf16.msra.mxu0 %v66
  %242 = vmatprep.subr.bf16.mxu0 0
  %243 = vmatpush1.bf16.msra.mxu0 %v67
  %244 = vmatprep.subr.bf16.mxu0 0
  %245 = vmatpush1.bf16.msra.mxu0 0
  %246 = vmatprep.subr.bf16.mxu0 0
  %247 = vmatpush1.bf16.msra.mxu0 0
  %248 = vmatprep.subr.bf16.mxu0 0
  %249 = vmatpush1.bf16.msra.mxu0 0
  %250 = vmatprep.subr.bf16.mxu0 0
  %251 = vmatpush1.bf16.msra.mxu0 0
  %252 = vmatprep.subr.bf16.mxu0 0
  %253 = vmatpush1.bf16.msra.mxu0 0
  %254 = vmatprep.subr.bf16.mxu0 0
  %255 = vmatpush1.bf16.msra.mxu0 0
  %256 = vmatprep.subr.bf16.mxu0 0
  %257 = vmatpush1.bf16.msra.mxu0 0
  %258 = vmatprep.subr.bf16.mxu0 0
  %259 = vmatpush1.bf16.msra.mxu0 0
  %260 = vmatprep.subr.bf16.mxu0 0
  %261 = vmatpush1.bf16.msra.mxu0 0
  %262 = vmatprep.subr.bf16.mxu0 0
  %263 = vmatpush1.bf16.msra.mxu0 0
  %264 = vmatprep.subr.bf16.mxu0 0
  %265 = vmatpush1.bf16.msra.mxu0 0
  %266 = vmatprep.subr.bf16.mxu0 0
  %267 = vmatpush1.bf16.msra.mxu0 0
  %268 = vmatprep.subr.bf16.mxu0 0
  %269 = vmatpush1.bf16.msra.mxu0 0
  %270 = vmatprep.subr.bf16.mxu0 0
  %271 = vmatpush1.bf16.msra.mxu0 0
  %272 = vmatprep.mubr.bf16.mxu0 0
  %273 = vmatmul.mubr.bf16.gmra.mrb[0].mxu0 %v238
  %v274 = vpop.f32.mrb[0].mxu0
  %v275 = vadd.f32 0.0, %v274
  %v276 = vpop.f32.mrb[0].mxu0
  %v277 = vpop.f32.mrb[0].mxu0
  %v278 = vpop.f32.mrb[0].mxu0
  %279 = vdwg.mxu0
  %v280 = vadd.f32 %v48, %v275
  %v281 = vmul.f32 %v280, %v29
  %v282 = vxor.u32 %v281, 2147483648
  %v283 = vmul.f32 %v282, 1.442695
  %v284 = vpow.pop %v283
  %v285 = vadd.f32 %v284, 1.0
  %v286 = vrcp.pop %v285
  %v287 = vmul.f32 1.0, %v286
  %v288 = vmul.f32 %v287, 2.0
  %v289 = vsub.f32 %v288, 1.0
  %v290 = vsel %vm28, %v289, %v287
  %v291 = vmul.f32 %v290, %v231
  %293 = vrot.lane.b32.xlu0 %v290, 64
  %v294 = vpop.permute.xlu0 %293
  %v296 = vmul.f32 %v290, %v294
  %298 = vrot.lane.b32.xlu0 %v296, 32
  %v299 = vpop.permute.xlu0 %298
  %v301 = vadd.f32 %v291, %v299
  %v302 = vtanh.pop %v301
  %304 = vrot.lane.b32.xlu0 %v302, 64
  %v305 = vpop.permute.xlu0 %304
  %v307 = vmul.f32 %v290, %v305
  %vm308 = vcmp.gt.f32.partialorder %v32, 0.5
  %v309 = vsel %vm308, 1, 0
  %310 = vset.pattern.permute.xlu0 0
  %311 = vperm.xlu0 %310, %v309
  %v312 = vpop.permute.xlu0 %311
  %vm313 = vcmp.eq.s32.totalorder %v312, 1
  %v314 = vsel %vm313, %v301, %v231
  %v315 = vsel %vm313, %v307, %v232
  %v316 = vpack.c.bf16 %v315, %v315
  %318 = vrot.lane.b32.xlu0 %v316, 32
  %v319 = vpop.permute.xlu0 %318
  %v321 = vsel %vm70, %v319, 0
  %323 = vmatprep.subr.bf16.mxu0 0
  %324 = vmatpush1.bf16.msra.mxu0 %v66
  %325 = vmatprep.subr.bf16.mxu0 0
  %326 = vmatpush1.bf16.msra.mxu0 %v67
  %327 = vmatprep.subr.bf16.mxu0 0
  %328 = vmatpush1.bf16.msra.mxu0 0
  %329 = vmatprep.subr.bf16.mxu0 0
  %330 = vmatpush1.bf16.msra.mxu0 0
  %331 = vmatprep.subr.bf16.mxu0 0
  %332 = vmatpush1.bf16.msra.mxu0 0
  %333 = vmatprep.subr.bf16.mxu0 0
  %334 = vmatpush1.bf16.msra.mxu0 0
  %335 = vmatprep.subr.bf16.mxu0 0
  %336 = vmatpush1.bf16.msra.mxu0 0
  %337 = vmatprep.subr.bf16.mxu0 0
  %338 = vmatpush1.bf16.msra.mxu0 0
  %339 = vmatprep.subr.bf16.mxu0 0
  %340 = vmatpush1.bf16.msra.mxu0 0
  %341 = vmatprep.subr.bf16.mxu0 0
  %342 = vmatpush1.bf16.msra.mxu0 0
  %343 = vmatprep.subr.bf16.mxu0 0
  %344 = vmatpush1.bf16.msra.mxu0 0
  %345 = vmatprep.subr.bf16.mxu0 0
  %346 = vmatpush1.bf16.msra.mxu0 0
  %347 = vmatprep.subr.bf16.mxu0 0
  %348 = vmatpush1.bf16.msra.mxu0 0
  %349 = vmatprep.subr.bf16.mxu0 0
  %350 = vmatpush1.bf16.msra.mxu0 0
  %351 = vmatprep.subr.bf16.mxu0 0
  %352 = vmatpush1.bf16.msra.mxu0 0
  %353 = vmatprep.subr.bf16.mxu0 0
  %354 = vmatpush1.bf16.msra.mxu0 0
  %355 = vmatprep.mubr.bf16.mxu0 0
  %356 = vmatmul.mubr.bf16.gmra.mrb[0].mxu0 %v321
  %v357 = vpop.f32.mrb[0].mxu0
  %v358 = vadd.f32 0.0, %v357
  %v359 = vpop.f32.mrb[0].mxu0
  %v360 = vpop.f32.mrb[0].mxu0
  %v361 = vpop.f32.mrb[0].mxu0
  %362 = vdwg.mxu0
  %v363 = vadd.f32 %v49, %v358
  %v364 = vmul.f32 %v363, %v29
  %v365 = vxor.u32 %v364, 2147483648
  %v366 = vmul.f32 %v365, 1.442695
  %v367 = vpow.pop %v366
  %v368 = vadd.f32 %v367, 1.0
  %v369 = vrcp.pop %v368
  %v370 = vmul.f32 1.0, %v369
  %v371 = vmul.f32 %v370, 2.0
  %v372 = vsub.f32 %v371, 1.0
  %v373 = vsel %vm28, %v372, %v370
  %v374 = vmul.f32 %v373, %v314
  %376 = vrot.lane.b32.xlu0 %v373, 64
  %v377 = vpop.permute.xlu0 %376
  %v379 = vmul.f32 %v373, %v377
  %381 = vrot.lane.b32.xlu0 %v379, 32
  %v382 = vpop.permute.xlu0 %381
  %v384 = vadd.f32 %v374, %v382
  %v385 = vtanh.pop %v384
  %387 = vrot.lane.b32.xlu0 %v385, 64
  %v388 = vpop.permute.xlu0 %387
  %v390 = vmul.f32 %v373, %v388
  %vm391 = vcmp.gt.f32.partialorder %v33, 0.5
  %v392 = vsel %vm391, 1, 0
  %393 = vset.pattern.permute.xlu0 0
  %394 = vperm.xlu0 %393, %v392
  %v395 = vpop.permute.xlu0 %394
  %vm396 = vcmp.eq.s32.totalorder %v395, 1
  %v397 = vsel %vm396, %v384, %v314
  %v398 = vsel %vm396, %v390, %v315
  %v399 = vpack.c.bf16 %v398, %v398
  %401 = vrot.lane.b32.xlu0 %v399, 32
  %v402 = vpop.permute.xlu0 %401
  %v404 = vsel %vm70, %v402, 0
  %406 = vmatprep.subr.bf16.mxu0 0
  %407 = vmatpush1.bf16.msra.mxu0 %v66
  %408 = vmatprep.subr.bf16.mxu0 0
  %409 = vmatpush1.bf16.msra.mxu0 %v67
  %410 = vmatprep.subr.bf16.mxu0 0
  %411 = vmatpush1.bf16.msra.mxu0 0
  %412 = vmatprep.subr.bf16.mxu0 0
  %413 = vmatpush1.bf16.msra.mxu0 0
  %414 = vmatprep.subr.bf16.mxu0 0
  %415 = vmatpush1.bf16.msra.mxu0 0
  %416 = vmatprep.subr.bf16.mxu0 0
  %417 = vmatpush1.bf16.msra.mxu0 0
  %418 = vmatprep.subr.bf16.mxu0 0
  %419 = vmatpush1.bf16.msra.mxu0 0
  %420 = vmatprep.subr.bf16.mxu0 0
  %421 = vmatpush1.bf16.msra.mxu0 0
  %422 = vmatprep.subr.bf16.mxu0 0
  %423 = vmatpush1.bf16.msra.mxu0 0
  %424 = vmatprep.subr.bf16.mxu0 0
  %425 = vmatpush1.bf16.msra.mxu0 0
  %426 = vmatprep.subr.bf16.mxu0 0
  %427 = vmatpush1.bf16.msra.mxu0 0
  %428 = vmatprep.subr.bf16.mxu0 0
  %429 = vmatpush1.bf16.msra.mxu0 0
  %430 = vmatprep.subr.bf16.mxu0 0
  %431 = vmatpush1.bf16.msra.mxu0 0
  %432 = vmatprep.subr.bf16.mxu0 0
  %433 = vmatpush1.bf16.msra.mxu0 0
  %434 = vmatprep.subr.bf16.mxu0 0
  %435 = vmatpush1.bf16.msra.mxu0 0
  %436 = vmatprep.subr.bf16.mxu0 0
  %437 = vmatpush1.bf16.msra.mxu0 0
  %438 = vmatprep.mubr.bf16.mxu0 0
  %439 = vmatmul.mubr.bf16.gmra.mrb[0].mxu0 %v404
  %v440 = vpop.f32.mrb[0].mxu0
  %v441 = vadd.f32 0.0, %v440
  %v442 = vpop.f32.mrb[0].mxu0
  %v443 = vpop.f32.mrb[0].mxu0
  %v444 = vpop.f32.mrb[0].mxu0
  %445 = vdwg.mxu0
  %v446 = vadd.f32 %v50, %v441
  %v447 = vmul.f32 %v446, %v29
  %v448 = vxor.u32 %v447, 2147483648
  %v449 = vmul.f32 %v448, 1.442695
  %v450 = vpow.pop %v449
  %v451 = vadd.f32 %v450, 1.0
  %v452 = vrcp.pop %v451
  %v453 = vmul.f32 1.0, %v452
  %v454 = vmul.f32 %v453, 2.0
  %v455 = vsub.f32 %v454, 1.0
  %v456 = vsel %vm28, %v455, %v453
  %v457 = vmul.f32 %v456, %v397
  %459 = vrot.lane.b32.xlu0 %v456, 64
  %v460 = vpop.permute.xlu0 %459
  %v462 = vmul.f32 %v456, %v460
  %464 = vrot.lane.b32.xlu0 %v462, 32
  %v465 = vpop.permute.xlu0 %464
  %v467 = vadd.f32 %v457, %v465
  %v468 = vtanh.pop %v467
  %470 = vrot.lane.b32.xlu0 %v468, 64
  %v471 = vpop.permute.xlu0 %470
  %v473 = vmul.f32 %v456, %v471
  %vm474 = vcmp.gt.f32.partialorder %v34, 0.5
  %v475 = vsel %vm474, 1, 0
  %476 = vset.pattern.permute.xlu0 0
  %477 = vperm.xlu0 %476, %v475
  %v478 = vpop.permute.xlu0 %477
  %vm479 = vcmp.eq.s32.totalorder %v478, 1
  %v480 = vsel %vm479, %v467, %v397
  %v481 = vsel %vm479, %v473, %v398
  %v482 = vpack.c.bf16 %v481, %v481
  %484 = vrot.lane.b32.xlu0 %v482, 32
  %v485 = vpop.permute.xlu0 %484
  %v487 = vsel %vm70, %v485, 0
  %489 = vmatprep.subr.bf16.mxu0 0
  %490 = vmatpush1.bf16.msra.mxu0 %v66
  %491 = vmatprep.subr.bf16.mxu0 0
  %492 = vmatpush1.bf16.msra.mxu0 %v67
  %493 = vmatprep.subr.bf16.mxu0 0
  %494 = vmatpush1.bf16.msra.mxu0 0
  %495 = vmatprep.subr.bf16.mxu0 0
  %496 = vmatpush1.bf16.msra.mxu0 0
  %497 = vmatprep.subr.bf16.mxu0 0
  %498 = vmatpush1.bf16.msra.mxu0 0
  %499 = vmatprep.subr.bf16.mxu0 0
  %500 = vmatpush1.bf16.msra.mxu0 0
  %501 = vmatprep.subr.bf16.mxu0 0
  %502 = vmatpush1.bf16.msra.mxu0 0
  %503 = vmatprep.subr.bf16.mxu0 0
  %504 = vmatpush1.bf16.msra.mxu0 0
  %505 = vmatprep.subr.bf16.mxu0 0
  %506 = vmatpush1.bf16.msra.mxu0 0
  %507 = vmatprep.subr.bf16.mxu0 0
  %508 = vmatpush1.bf16.msra.mxu0 0
  %509 = vmatprep.subr.bf16.mxu0 0
  %510 = vmatpush1.bf16.msra.mxu0 0
  %511 = vmatprep.subr.bf16.mxu0 0
  %512 = vmatpush1.bf16.msra.mxu0 0
  %513 = vmatprep.subr.bf16.mxu0 0
  %514 = vmatpush1.bf16.msra.mxu0 0
  %515 = vmatprep.subr.bf16.mxu0 0
  %516 = vmatpush1.bf16.msra.mxu0 0
  %517 = vmatprep.subr.bf16.mxu0 0
  %518 = vmatpush1.bf16.msra.mxu0 0
  %519 = vmatprep.subr.bf16.mxu0 0
  %520 = vmatpush1.bf16.msra.mxu0 0
  %521 = vmatprep.mubr.bf16.mxu0 0
  %522 = vmatmul.mubr.bf16.gmra.mrb[0].mxu0 %v487
  %v523 = vpop.f32.mrb[0].mxu0
  %v524 = vadd.f32 0.0, %v523
  %v525 = vpop.f32.mrb[0].mxu0
  %v526 = vpop.f32.mrb[0].mxu0
  %v527 = vpop.f32.mrb[0].mxu0
  %528 = vdwg.mxu0
  %v529 = vadd.f32 %v51, %v524
  %v530 = vmul.f32 %v529, %v29
  %v531 = vxor.u32 %v530, 2147483648
  %v532 = vmul.f32 %v531, 1.442695
  %v533 = vpow.pop %v532
  %v534 = vadd.f32 %v533, 1.0
  %v535 = vrcp.pop %v534
  %v536 = vmul.f32 1.0, %v535
  %v537 = vmul.f32 %v536, 2.0
  %v538 = vsub.f32 %v537, 1.0
  %v539 = vsel %vm28, %v538, %v536
  %v540 = vmul.f32 %v539, %v480
  %542 = vrot.lane.b32.xlu0 %v539, 64
  %v543 = vpop.permute.xlu0 %542
  %v545 = vmul.f32 %v539, %v543
  %547 = vrot.lane.b32.xlu0 %v545, 32
  %v548 = vpop.permute.xlu0 %547
  %v550 = vadd.f32 %v540, %v548
  %v551 = vtanh.pop %v550
  %553 = vrot.lane.b32.xlu0 %v551, 64
  %v554 = vpop.permute.xlu0 %553
  %v556 = vmul.f32 %v539, %v554
  %vm557 = vcmp.gt.f32.partialorder %v35, 0.5
  %v558 = vsel %vm557, 1, 0
  %559 = vset.pattern.permute.xlu0 0
  %560 = vperm.xlu0 %559, %v558
  %v561 = vpop.permute.xlu0 %560
  %vm562 = vcmp.eq.s32.totalorder %v561, 1
  %v563 = vsel %vm562, %v550, %v480
  %v564 = vsel %vm562, %v556, %v481
  %v565 = vpack.c.bf16 %v564, %v564
  %567 = vrot.lane.b32.xlu0 %v565, 32
  %v568 = vpop.permute.xlu0 %567
  %v570 = vsel %vm70, %v568, 0
  %572 = vmatprep.subr.bf16.mxu0 0
  %573 = vmatpush1.bf16.msra.mxu0 %v66
  %574 = vmatprep.subr.bf16.mxu0 0
  %575 = vmatpush1.bf16.msra.mxu0 %v67
  %576 = vmatprep.subr.bf16.mxu0 0
  %577 = vmatpush1.bf16.msra.mxu0 0
  %578 = vmatprep.subr.bf16.mxu0 0
  %579 = vmatpush1.bf16.msra.mxu0 0
  %580 = vmatprep.subr.bf16.mxu0 0
  %581 = vmatpush1.bf16.msra.mxu0 0
  %582 = vmatprep.subr.bf16.mxu0 0
  %583 = vmatpush1.bf16.msra.mxu0 0
  %584 = vmatprep.subr.bf16.mxu0 0
  %585 = vmatpush1.bf16.msra.mxu0 0
  %586 = vmatprep.subr.bf16.mxu0 0
  %587 = vmatpush1.bf16.msra.mxu0 0
  %588 = vmatprep.subr.bf16.mxu0 0
  %589 = vmatpush1.bf16.msra.mxu0 0
  %590 = vmatprep.subr.bf16.mxu0 0
  %591 = vmatpush1.bf16.msra.mxu0 0
  %592 = vmatprep.subr.bf16.mxu0 0
  %593 = vmatpush1.bf16.msra.mxu0 0
  %594 = vmatprep.subr.bf16.mxu0 0
  %595 = vmatpush1.bf16.msra.mxu0 0
  %596 = vmatprep.subr.bf16.mxu0 0
  %597 = vmatpush1.bf16.msra.mxu0 0
  %598 = vmatprep.subr.bf16.mxu0 0
  %599 = vmatpush1.bf16.msra.mxu0 0
  %600 = vmatprep.subr.bf16.mxu0 0
  %601 = vmatpush1.bf16.msra.mxu0 0
  %602 = vmatprep.subr.bf16.mxu0 0
  %603 = vmatpush1.bf16.msra.mxu0 0
  %604 = vmatprep.mubr.bf16.mxu0 0
  %605 = vmatmul.mubr.bf16.gmra.mrb[0].mxu0 %v570
  %v606 = vpop.f32.mrb[0].mxu0
  %v607 = vadd.f32 0.0, %v606
  %v608 = vpop.f32.mrb[0].mxu0
  %v609 = vpop.f32.mrb[0].mxu0
  %v610 = vpop.f32.mrb[0].mxu0
  %611 = vdwg.mxu0
  %v612 = vadd.f32 %v52, %v607
  %v613 = vmul.f32 %v612, %v29
  %v614 = vxor.u32 %v613, 2147483648
  %v615 = vmul.f32 %v614, 1.442695
  %v616 = vpow.pop %v615
  %v617 = vadd.f32 %v616, 1.0
  %v618 = vrcp.pop %v617
  %v619 = vmul.f32 1.0, %v618
  %v620 = vmul.f32 %v619, 2.0
  %v621 = vsub.f32 %v620, 1.0
  %v622 = vsel %vm28, %v621, %v619
  %v623 = vmul.f32 %v622, %v563
  %625 = vrot.lane.b32.xlu0 %v622, 64
  %v626 = vpop.permute.xlu0 %625
  %v628 = vmul.f32 %v622, %v626
  %630 = vrot.lane.b32.xlu0 %v628, 32
  %v631 = vpop.permute.xlu0 %630
  %v633 = vadd.f32 %v623, %v631
  %v634 = vtanh.pop %v633
  %636 = vrot.lane.b32.xlu0 %v634, 64
  %v637 = vpop.permute.xlu0 %636
  %v639 = vmul.f32 %v622, %v637
  %vm640 = vcmp.gt.f32.partialorder %v36, 0.5
  %v641 = vsel %vm640, 1, 0
  %642 = vset.pattern.permute.xlu0 0
  %643 = vperm.xlu0 %642, %v641
  %v644 = vpop.permute.xlu0 %643
  %vm645 = vcmp.eq.s32.totalorder %v644, 1
  %v646 = vsel %vm645, %v633, %v563
  %v647 = vsel %vm645, %v639, %v564
  %v648 = vpack.c.bf16 %v647, %v647
  %650 = vrot.lane.b32.xlu0 %v648, 32
  %v651 = vpop.permute.xlu0 %650
  %v653 = vsel %vm70, %v651, 0
  %655 = vmatprep.subr.bf16.mxu0 0
  %656 = vmatpush1.bf16.msra.mxu0 %v66
  %657 = vmatprep.subr.bf16.mxu0 0
  %658 = vmatpush1.bf16.msra.mxu0 %v67
  %659 = vmatprep.subr.bf16.mxu0 0
  %660 = vmatpush1.bf16.msra.mxu0 0
  %661 = vmatprep.subr.bf16.mxu0 0
  %662 = vmatpush1.bf16.msra.mxu0 0
  %663 = vmatprep.subr.bf16.mxu0 0
  %664 = vmatpush1.bf16.msra.mxu0 0
  %665 = vmatprep.subr.bf16.mxu0 0
  %666 = vmatpush1.bf16.msra.mxu0 0
  %667 = vmatprep.subr.bf16.mxu0 0
  %668 = vmatpush1.bf16.msra.mxu0 0
  %669 = vmatprep.subr.bf16.mxu0 0
  %670 = vmatpush1.bf16.msra.mxu0 0
  %671 = vmatprep.subr.bf16.mxu0 0
  %672 = vmatpush1.bf16.msra.mxu0 0
  %673 = vmatprep.subr.bf16.mxu0 0
  %674 = vmatpush1.bf16.msra.mxu0 0
  %675 = vmatprep.subr.bf16.mxu0 0
  %676 = vmatpush1.bf16.msra.mxu0 0
  %677 = vmatprep.subr.bf16.mxu0 0
  %678 = vmatpush1.bf16.msra.mxu0 0
  %679 = vmatprep.subr.bf16.mxu0 0
  %680 = vmatpush1.bf16.msra.mxu0 0
  %681 = vmatprep.subr.bf16.mxu0 0
  %682 = vmatpush1.bf16.msra.mxu0 0
  %683 = vmatprep.subr.bf16.mxu0 0
  %684 = vmatpush1.bf16.msra.mxu0 0
  %685 = vmatprep.subr.bf16.mxu0 0
  %686 = vmatpush1.bf16.msra.mxu0 0
  %687 = vmatprep.mubr.bf16.mxu0 0
  %688 = vmatmul.mubr.bf16.gmra.mrb[0].mxu0 %v653
  %v689 = vpop.f32.mrb[0].mxu0
  %v690 = vadd.f32 0.0, %v689
  %v691 = vpop.f32.mrb[0].mxu0
  %v692 = vpop.f32.mrb[0].mxu0
  %v693 = vpop.f32.mrb[0].mxu0
  %694 = vdwg.mxu0
  %v695 = vadd.f32 %v53, %v690
  %v696 = vmul.f32 %v695, %v29
  %v697 = vxor.u32 %v696, 2147483648
  %v698 = vmul.f32 %v697, 1.442695
  %v699 = vpow.pop %v698
  %v700 = vadd.f32 %v699, 1.0
  %v701 = vrcp.pop %v700
  %v702 = vmul.f32 1.0, %v701
  %v703 = vmul.f32 %v702, 2.0
  %v704 = vsub.f32 %v703, 1.0
  %v705 = vsel %vm28, %v704, %v702
  %v706 = vmul.f32 %v705, %v646
  %708 = vrot.lane.b32.xlu0 %v705, 64
  %v709 = vpop.permute.xlu0 %708
  %v711 = vmul.f32 %v705, %v709
  %713 = vrot.lane.b32.xlu0 %v711, 32
  %v714 = vpop.permute.xlu0 %713
  %v716 = vadd.f32 %v706, %v714
  %v717 = vtanh.pop %v716
  %719 = vrot.lane.b32.xlu0 %v717, 64
  %v720 = vpop.permute.xlu0 %719
  %v722 = vmul.f32 %v705, %v720
  %vm723 = vcmp.gt.f32.partialorder %v37, 0.5
  %v724 = vsel %vm723, 1, 0
  %725 = vset.pattern.permute.xlu0 0
  %726 = vperm.xlu0 %725, %v724
  %v727 = vpop.permute.xlu0 %726
  %vm728 = vcmp.eq.s32.totalorder %v727, 1
  %v729 = vsel %vm728, %v722, %v647
  %v730 = vpack.c.bf16 %v232, %v149
  %v731 = vpack.c.bf16 %v398, %v315
  %v732 = vpack.c.bf16 %v564, %v481
  %v733 = vpack.c.bf16 %v729, %v647
  %v734 = vld [vmem:[%s2] sm:$0xf]
  %v735 = vld [vmem:[%s2 + $0x4] sm:$0xf]
  %v736 = vld [vmem:[%s2 + $0x8] sm:$0xf]
  %v737 = vld [vmem:[%s2 + $0xc] sm:$0xf]
  %v738 = vld [vmem:[%s3] sm:$0x1]
  %v740 = vlaneseq
  %v741 = vshrl.u32 %v740, 7
  %v742 = vsub.s32 0, %v741
  %v743 = vrot.slane %v738, %v742
  %749 = vrot.lane.b32.xlu0 %v730, 32
  %v750 = vpop.permute.xlu0 %749
  %751 = vrot.lane.b32.xlu0 %v731, 32
  %v752 = vpop.permute.xlu0 %751
  %753 = vrot.lane.b32.xlu0 %v732, 32
  %v754 = vpop.permute.xlu0 %753
  %755 = vrot.lane.b32.xlu0 %v733, 32
  %v756 = vpop.permute.xlu0 %755
  %v761 = vunpack.c.l.b16 %v734
  %v762 = vunpack.c.l.b16 %v735
  %v763 = vunpack.c.l.b16 %v736
  %v764 = vunpack.c.l.b16 %v737
  %v765 = vpack.c.b16 %v762, %v761
  %v766 = vpack.c.b16 %v764, %v763
  %v770 = vsel %vm70, %v750, 0
  %v773 = vsel %vm70, %v752, 0
  %v776 = vsel %vm70, %v754, 0
  %v779 = vsel %vm70, %v756, 0
  %781 = vmatprep.subr.bf16.mxu0 0
  %782 = vmatpush1.bf16.msra.mxu0 %v765
  %783 = vmatprep.subr.bf16.mxu0 0
  %784 = vmatpush1.bf16.msra.mxu0 %v766
  %785 = vmatprep.subr.bf16.mxu0 0
  %786 = vmatpush1.bf16.msra.mxu0 0
  %787 = vmatprep.subr.bf16.mxu0 0
  %788 = vmatpush1.bf16.msra.mxu0 0
  %789 = vmatprep.subr.bf16.mxu0 0
  %790 = vmatpush1.bf16.msra.mxu0 0
  %791 = vmatprep.subr.bf16.mxu0 0
  %792 = vmatpush1.bf16.msra.mxu0 0
  %793 = vmatprep.subr.bf16.mxu0 0
  %794 = vmatpush1.bf16.msra.mxu0 0
  %795 = vmatprep.subr.bf16.mxu0 0
  %796 = vmatpush1.bf16.msra.mxu0 0
  %797 = vmatprep.subr.bf16.mxu0 0
  %798 = vmatpush1.bf16.msra.mxu0 0
  %799 = vmatprep.subr.bf16.mxu0 0
  %800 = vmatpush1.bf16.msra.mxu0 0
  %801 = vmatprep.subr.bf16.mxu0 0
  %802 = vmatpush1.bf16.msra.mxu0 0
  %803 = vmatprep.subr.bf16.mxu0 0
  %804 = vmatpush1.bf16.msra.mxu0 0
  %805 = vmatprep.subr.bf16.mxu0 0
  %806 = vmatpush1.bf16.msra.mxu0 0
  %807 = vmatprep.subr.bf16.mxu0 0
  %808 = vmatpush1.bf16.msra.mxu0 0
  %809 = vmatprep.subr.bf16.mxu0 0
  %810 = vmatpush1.bf16.msra.mxu0 0
  %811 = vmatprep.subr.bf16.mxu0 0
  %812 = vmatpush1.bf16.msra.mxu0 0
  %813 = vmatprep.mubr.bf16.mxu0 0
  %814 = vmatmul.mubr.bf16.gmra.mrb[0].mxu0 %v770
  %v815 = vpop.f32.mrb[0].mxu0
  %v816 = vadd.f32 %v743, %v815
  %v817 = vpop.f32.mrb[0].mxu0
  %v818 = vpop.f32.mrb[0].mxu0
  %v819 = vadd.f32 %v743, %v818
  %v820 = vpop.f32.mrb[0].mxu0
  %821 = vmatprep.mubr.bf16.mxu0 0
  %822 = vmatmul.mubr.bf16.gmra.mrb[0].mxu0 %v773
  %v823 = vpop.f32.mrb[0].mxu0
  %v824 = vadd.f32 %v743, %v823
  %v825 = vpop.f32.mrb[0].mxu0
  %v826 = vpop.f32.mrb[0].mxu0
  %v827 = vadd.f32 %v743, %v826
  %v828 = vpop.f32.mrb[0].mxu0
  %829 = vmatprep.mubr.bf16.mxu0 0
  %830 = vmatmul.mubr.bf16.gmra.mrb[0].mxu0 %v776
  %v831 = vpop.f32.mrb[0].mxu0
  %v832 = vadd.f32 %v743, %v831
  %v833 = vpop.f32.mrb[0].mxu0
  %v834 = vpop.f32.mrb[0].mxu0
  %v835 = vadd.f32 %v743, %v834
  %v836 = vpop.f32.mrb[0].mxu0
  %837 = vmatprep.mubr.bf16.mxu0 0
  %838 = vmatmul.mubr.bf16.gmra.mrb[0].mxu0 %v779
  %v839 = vpop.f32.mrb[0].mxu0
  %v840 = vadd.f32 %v743, %v839
  %v841 = vpop.f32.mrb[0].mxu0
  %v842 = vpop.f32.mrb[0].mxu0
  %v843 = vadd.f32 %v743, %v842
  %v844 = vpop.f32.mrb[0].mxu0
  %845 = vdwg.mxu0
  %v846 = vld [vmem:[%s5] sm:$0xf]
  %v847 = vld [vmem:[%s5 + $0x4] sm:$0xf]
  %v848 = vld [vmem:[%s5 + $0x8] sm:$0xf]
  %v849 = vld [vmem:[%s5 + $0xc] sm:$0xf]
  %v854 = vunpack.c.l.b16 %v846
  %v855 = vunpack.c.l.b16 %v847
  %v856 = vunpack.c.l.b16 %v848
  %v857 = vunpack.c.l.b16 %v849
  %v858 = vpack.c.b16 %v855, %v854
  %v859 = vpack.c.b16 %v857, %v856
  %862 = vmatprep.subr.bf16.mxu0 0
  %863 = vmatpush1.bf16.msra.mxu0 %v858
  %864 = vmatprep.subr.bf16.mxu0 0
  %865 = vmatpush1.bf16.msra.mxu0 %v859
  %866 = vmatprep.subr.bf16.mxu0 0
  %867 = vmatpush1.bf16.msra.mxu0 0
  %868 = vmatprep.subr.bf16.mxu0 0
  %869 = vmatpush1.bf16.msra.mxu0 0
  %870 = vmatprep.subr.bf16.mxu0 0
  %871 = vmatpush1.bf16.msra.mxu0 0
  %872 = vmatprep.subr.bf16.mxu0 0
  %873 = vmatpush1.bf16.msra.mxu0 0
  %874 = vmatprep.subr.bf16.mxu0 0
  %875 = vmatpush1.bf16.msra.mxu0 0
  %876 = vmatprep.subr.bf16.mxu0 0
  %877 = vmatpush1.bf16.msra.mxu0 0
  %878 = vmatprep.subr.bf16.mxu0 0
  %879 = vmatpush1.bf16.msra.mxu0 0
  %880 = vmatprep.subr.bf16.mxu0 0
  %881 = vmatpush1.bf16.msra.mxu0 0
  %882 = vmatprep.subr.bf16.mxu0 0
  %883 = vmatpush1.bf16.msra.mxu0 0
  %884 = vmatprep.subr.bf16.mxu0 0
  %885 = vmatpush1.bf16.msra.mxu0 0
  %886 = vmatprep.subr.bf16.mxu0 0
  %887 = vmatpush1.bf16.msra.mxu0 0
  %888 = vmatprep.subr.bf16.mxu0 0
  %889 = vmatpush1.bf16.msra.mxu0 0
  %890 = vmatprep.subr.bf16.mxu0 0
  %891 = vmatpush1.bf16.msra.mxu0 0
  %892 = vmatprep.subr.bf16.mxu0 0
  %893 = vmatpush1.bf16.msra.mxu0 0
  %894 = vmatprep.mubr.bf16.mxu0 0
  %895 = vmatmul.mubr.bf16.gmra.mrb[0].mxu0 %v72
  %v896 = vpop.f32.mrb[0].mxu0
  %v897 = vadd.f32 0.0, %v896
  %v898 = vpop.f32.mrb[0].mxu0
  %v899 = vpop.f32.mrb[0].mxu0
  %v900 = vpop.f32.mrb[0].mxu0
  %901 = vdwg.mxu0
  %v902 = vadd.f32 %v816, %v897
  %v903 = vmul.f32 %v902, %v29
  %v904 = vxor.u32 %v903, 2147483648
  %v905 = vmul.f32 %v904, 1.442695
  %v906 = vpow.pop %v905
  %v907 = vadd.f32 %v906, 1.0
  %v908 = vrcp.pop %v907
  %v909 = vmul.f32 1.0, %v908
  %v910 = vmul.f32 %v909, 2.0
  %v911 = vsub.f32 %v910, 1.0
  %v912 = vsel %vm28, %v911, %v909
  %v913 = vmul.f32 %v912, 0.0
  %915 = vrot.lane.b32.xlu0 %v912, 64
  %v916 = vpop.permute.xlu0 %915
  %v918 = vmul.f32 %v912, %v916
  %920 = vrot.lane.b32.xlu0 %v918, 32
  %v921 = vpop.permute.xlu0 %920
  %v923 = vadd.f32 %v913, %v921
  %v924 = vtanh.pop %v923
  %926 = vrot.lane.b32.xlu0 %v924, 64
  %v927 = vpop.permute.xlu0 %926
  %v929 = vmul.f32 %v912, %v927
  %v930 = vsel %vm147, %v923, 0.0
  %v931 = vsel %vm147, %v929, 0.0
  %v932 = vpack.c.bf16 %v931, %v931
  %934 = vrot.lane.b32.xlu0 %v932, 32
  %v935 = vpop.permute.xlu0 %934
  %v937 = vsel %vm70, %v935, 0
  %939 = vmatprep.subr.bf16.mxu0 0
  %940 = vmatpush1.bf16.msra.mxu0 %v858
  %941 = vmatprep.subr.bf16.mxu0 0
  %942 = vmatpush1.bf16.msra.mxu0 %v859
  %943 = vmatprep.subr.bf16.mxu0 0
  %944 = vmatpush1.bf16.msra.mxu0 0
  %945 = vmatprep.subr.bf16.mxu0 0
  %946 = vmatpush1.bf16.msra.mxu0 0
  %947 = vmatprep.subr.bf16.mxu0 0
  %948 = vmatpush1.bf16.msra.mxu0 0
  %949 = vmatprep.subr.bf16.mxu0 0
  %950 = vmatpush1.bf16.msra.mxu0 0
  %951 = vmatprep.subr.bf16.mxu0 0
  %952 = vmatpush1.bf16.msra.mxu0 0
  %953 = vmatprep.subr.bf16.mxu0 0
  %954 = vmatpush1.bf16.msra.mxu0 0
  %955 = vmatprep.subr.bf16.mxu0 0
  %956 = vmatpush1.bf16.msra.mxu0 0
  %957 = vmatprep.subr.bf16.mxu0 0
  %958 = vmatpush1.bf16.msra.mxu0 0
  %959 = vmatprep.subr.bf16.mxu0 0
  %960 = vmatpush1.bf16.msra.mxu0 0
  %961 = vmatprep.subr.bf16.mxu0 0
  %962 = vmatpush1.bf16.msra.mxu0 0
  %963 = vmatprep.subr.bf16.mxu0 0
  %964 = vmatpush1.bf16.msra.mxu0 0
  %965 = vmatprep.subr.bf16.mxu0 0
  %966 = vmatpush1.bf16.msra.mxu0 0
  %967 = vmatprep.subr.bf16.mxu0 0
  %968 = vmatpush1.bf16.msra.mxu0 0
  %969 = vmatprep.subr.bf16.mxu0 0
  %970 = vmatpush1.bf16.msra.mxu0 0
  %971 = vmatprep.mubr.bf16.mxu0 0
  %972 = vmatmul.mubr.bf16.gmra.mrb[0].mxu0 %v937
  %v973 = vpop.f32.mrb[0].mxu0
  %v974 = vadd.f32 0.0, %v973
  %v975 = vpop.f32.mrb[0].mxu0
  %v976 = vpop.f32.mrb[0].mxu0
  %v977 = vpop.f32.mrb[0].mxu0
  %978 = vdwg.mxu0
  %v979 = vadd.f32 %v819, %v974
  %v980 = vmul.f32 %v979, %v29
  %v981 = vxor.u32 %v980, 2147483648
  %v982 = vmul.f32 %v981, 1.442695
  %v983 = vpow.pop %v982
  %v984 = vadd.f32 %v983, 1.0
  %v985 = vrcp.pop %v984
  %v986 = vmul.f32 1.0, %v985
  %v987 = vmul.f32 %v986, 2.0
  %v988 = vsub.f32 %v987, 1.0
  %v989 = vsel %vm28, %v988, %v986
  %v990 = vmul.f32 %v989, %v930
  %992 = vrot.lane.b32.xlu0 %v989, 64
  %v993 = vpop.permute.xlu0 %992
  %v995 = vmul.f32 %v989, %v993
  %997 = vrot.lane.b32.xlu0 %v995, 32
  %v998 = vpop.permute.xlu0 %997
  %v1000 = vadd.f32 %v990, %v998
  %v1001 = vtanh.pop %v1000
  %1003 = vrot.lane.b32.xlu0 %v1001, 64
  %v1004 = vpop.permute.xlu0 %1003
  %v1006 = vmul.f32 %v989, %v1004
  %v1007 = vsel %vm230, %v1000, %v930
  %v1008 = vsel %vm230, %v1006, %v931
  %v1009 = vpack.c.bf16 %v1008, %v1008
  %1011 = vrot.lane.b32.xlu0 %v1009, 32
  %v1012 = vpop.permute.xlu0 %1011
  %v1014 = vsel %vm70, %v1012, 0
  %1016 = vmatprep.subr.bf16.mxu0 0
  %1017 = vmatpush1.bf16.msra.mxu0 %v858
  %1018 = vmatprep.subr.bf16.mxu0 0
  %1019 = vmatpush1.bf16.msra.mxu0 %v859
  %1020 = vmatprep.subr.bf16.mxu0 0
  %1021 = vmatpush1.bf16.msra.mxu0 0
  %1022 = vmatprep.subr.bf16.mxu0 0
  %1023 = vmatpush1.bf16.msra.mxu0 0
  %1024 = vmatprep.subr.bf16.mxu0 0
  %1025 = vmatpush1.bf16.msra.mxu0 0
  %1026 = vmatprep.subr.bf16.mxu0 0
  %1027 = vmatpush1.bf16.msra.mxu0 0
  %1028 = vmatprep.subr.bf16.mxu0 0
  %1029 = vmatpush1.bf16.msra.mxu0 0
  %1030 = vmatprep.subr.bf16.mxu0 0
  %1031 = vmatpush1.bf16.msra.mxu0 0
  %1032 = vmatprep.subr.bf16.mxu0 0
  %1033 = vmatpush1.bf16.msra.mxu0 0
  %1034 = vmatprep.subr.bf16.mxu0 0
  %1035 = vmatpush1.bf16.msra.mxu0 0
  %1036 = vmatprep.subr.bf16.mxu0 0
  %1037 = vmatpush1.bf16.msra.mxu0 0
  %1038 = vmatprep.subr.bf16.mxu0 0
  %1039 = vmatpush1.bf16.msra.mxu0 0
  %1040 = vmatprep.subr.bf16.mxu0 0
  %1041 = vmatpush1.bf16.msra.mxu0 0
  %1042 = vmatprep.subr.bf16.mxu0 0
  %1043 = vmatpush1.bf16.msra.mxu0 0
  %1044 = vmatprep.subr.bf16.mxu0 0
  %1045 = vmatpush1.bf16.msra.mxu0 0
  %1046 = vmatprep.subr.bf16.mxu0 0
  %1047 = vmatpush1.bf16.msra.mxu0 0
  %1048 = vmatprep.mubr.bf16.mxu0 0
  %1049 = vmatmul.mubr.bf16.gmra.mrb[0].mxu0 %v1014
  %v1050 = vpop.f32.mrb[0].mxu0
  %v1051 = vadd.f32 0.0, %v1050
  %v1052 = vpop.f32.mrb[0].mxu0
  %v1053 = vpop.f32.mrb[0].mxu0
  %v1054 = vpop.f32.mrb[0].mxu0
  %1055 = vdwg.mxu0
  %v1056 = vadd.f32 %v824, %v1051
  %v1057 = vmul.f32 %v1056, %v29
  %v1058 = vxor.u32 %v1057, 2147483648
  %v1059 = vmul.f32 %v1058, 1.442695
  %v1060 = vpow.pop %v1059
  %v1061 = vadd.f32 %v1060, 1.0
  %v1062 = vrcp.pop %v1061
  %v1063 = vmul.f32 1.0, %v1062
  %v1064 = vmul.f32 %v1063, 2.0
  %v1065 = vsub.f32 %v1064, 1.0
  %v1066 = vsel %vm28, %v1065, %v1063
  %v1067 = vmul.f32 %v1066, %v1007
  %1069 = vrot.lane.b32.xlu0 %v1066, 64
  %v1070 = vpop.permute.xlu0 %1069
  %v1072 = vmul.f32 %v1066, %v1070
  %1074 = vrot.lane.b32.xlu0 %v1072, 32
  %v1075 = vpop.permute.xlu0 %1074
  %v1077 = vadd.f32 %v1067, %v1075
  %v1078 = vtanh.pop %v1077
  %1080 = vrot.lane.b32.xlu0 %v1078, 64
  %v1081 = vpop.permute.xlu0 %1080
  %v1083 = vmul.f32 %v1066, %v1081
  %v1084 = vsel %vm313, %v1077, %v1007
  %v1085 = vsel %vm313, %v1083, %v1008
  %v1086 = vpack.c.bf16 %v1085, %v1085
  %1088 = vrot.lane.b32.xlu0 %v1086, 32
  %v1089 = vpop.permute.xlu0 %1088
  %v1091 = vsel %vm70, %v1089, 0
  %1093 = vmatprep.subr.bf16.mxu0 0
  %1094 = vmatpush1.bf16.msra.mxu0 %v858
  %1095 = vmatprep.subr.bf16.mxu0 0
  %1096 = vmatpush1.bf16.msra.mxu0 %v859
  %1097 = vmatprep.subr.bf16.mxu0 0
  %1098 = vmatpush1.bf16.msra.mxu0 0
  %1099 = vmatprep.subr.bf16.mxu0 0
  %1100 = vmatpush1.bf16.msra.mxu0 0
  %1101 = vmatprep.subr.bf16.mxu0 0
  %1102 = vmatpush1.bf16.msra.mxu0 0
  %1103 = vmatprep.subr.bf16.mxu0 0
  %1104 = vmatpush1.bf16.msra.mxu0 0
  %1105 = vmatprep.subr.bf16.mxu0 0
  %1106 = vmatpush1.bf16.msra.mxu0 0
  %1107 = vmatprep.subr.bf16.mxu0 0
  %1108 = vmatpush1.bf16.msra.mxu0 0
  %1109 = vmatprep.subr.bf16.mxu0 0
  %1110 = vmatpush1.bf16.msra.mxu0 0
  %1111 = vmatprep.subr.bf16.mxu0 0
  %1112 = vmatpush1.bf16.msra.mxu0 0
  %1113 = vmatprep.subr.bf16.mxu0 0
  %1114 = vmatpush1.bf16.msra.mxu0 0
  %1115 = vmatprep.subr.bf16.mxu0 0
  %1116 = vmatpush1.bf16.msra.mxu0 0
  %1117 = vmatprep.subr.bf16.mxu0 0
  %1118 = vmatpush1.bf16.msra.mxu0 0
  %1119 = vmatprep.subr.bf16.mxu0 0
  %1120 = vmatpush1.bf16.msra.mxu0 0
  %1121 = vmatprep.subr.bf16.mxu0 0
  %1122 = vmatpush1.bf16.msra.mxu0 0
  %1123 = vmatprep.subr.bf16.mxu0 0
  %1124 = vmatpush1.bf16.msra.mxu0 0
  %1125 = vmatprep.mubr.bf16.mxu0 0
  %1126 = vmatmul.mubr.bf16.gmra.mrb[0].mxu0 %v1091
  %v1127 = vpop.f32.mrb[0].mxu0
  %v1128 = vadd.f32 0.0, %v1127
  %v1129 = vpop.f32.mrb[0].mxu0
  %v1130 = vpop.f32.mrb[0].mxu0
  %v1131 = vpop.f32.mrb[0].mxu0
  %1132 = vdwg.mxu0
  %v1133 = vadd.f32 %v827, %v1128
  %v1134 = vmul.f32 %v1133, %v29
  %v1135 = vxor.u32 %v1134, 2147483648
  %v1136 = vmul.f32 %v1135, 1.442695
  %v1137 = vpow.pop %v1136
  %v1138 = vadd.f32 %v1137, 1.0
  %v1139 = vrcp.pop %v1138
  %v1140 = vmul.f32 1.0, %v1139
  %v1141 = vmul.f32 %v1140, 2.0
  %v1142 = vsub.f32 %v1141, 1.0
  %v1143 = vsel %vm28, %v1142, %v1140
  %v1144 = vmul.f32 %v1143, %v1084
  %1146 = vrot.lane.b32.xlu0 %v1143, 64
  %v1147 = vpop.permute.xlu0 %1146
  %v1149 = vmul.f32 %v1143, %v1147
  %1151 = vrot.lane.b32.xlu0 %v1149, 32
  %v1152 = vpop.permute.xlu0 %1151
  %v1154 = vadd.f32 %v1144, %v1152
  %v1155 = vtanh.pop %v1154
  %1157 = vrot.lane.b32.xlu0 %v1155, 64
  %v1158 = vpop.permute.xlu0 %1157
  %v1160 = vmul.f32 %v1143, %v1158
  %v1161 = vsel %vm396, %v1154, %v1084
  %v1162 = vsel %vm396, %v1160, %v1085
  %v1163 = vpack.c.bf16 %v1162, %v1162
  %1165 = vrot.lane.b32.xlu0 %v1163, 32
  %v1166 = vpop.permute.xlu0 %1165
  %v1168 = vsel %vm70, %v1166, 0
  %1170 = vmatprep.subr.bf16.mxu0 0
  %1171 = vmatpush1.bf16.msra.mxu0 %v858
  %1172 = vmatprep.subr.bf16.mxu0 0
  %1173 = vmatpush1.bf16.msra.mxu0 %v859
  %1174 = vmatprep.subr.bf16.mxu0 0
  %1175 = vmatpush1.bf16.msra.mxu0 0
  %1176 = vmatprep.subr.bf16.mxu0 0
  %1177 = vmatpush1.bf16.msra.mxu0 0
  %1178 = vmatprep.subr.bf16.mxu0 0
  %1179 = vmatpush1.bf16.msra.mxu0 0
  %1180 = vmatprep.subr.bf16.mxu0 0
  %1181 = vmatpush1.bf16.msra.mxu0 0
  %1182 = vmatprep.subr.bf16.mxu0 0
  %1183 = vmatpush1.bf16.msra.mxu0 0
  %1184 = vmatprep.subr.bf16.mxu0 0
  %1185 = vmatpush1.bf16.msra.mxu0 0
  %1186 = vmatprep.subr.bf16.mxu0 0
  %1187 = vmatpush1.bf16.msra.mxu0 0
  %1188 = vmatprep.subr.bf16.mxu0 0
  %1189 = vmatpush1.bf16.msra.mxu0 0
  %1190 = vmatprep.subr.bf16.mxu0 0
  %1191 = vmatpush1.bf16.msra.mxu0 0
  %1192 = vmatprep.subr.bf16.mxu0 0
  %1193 = vmatpush1.bf16.msra.mxu0 0
  %1194 = vmatprep.subr.bf16.mxu0 0
  %1195 = vmatpush1.bf16.msra.mxu0 0
  %1196 = vmatprep.subr.bf16.mxu0 0
  %1197 = vmatpush1.bf16.msra.mxu0 0
  %1198 = vmatprep.subr.bf16.mxu0 0
  %1199 = vmatpush1.bf16.msra.mxu0 0
  %1200 = vmatprep.subr.bf16.mxu0 0
  %1201 = vmatpush1.bf16.msra.mxu0 0
  %1202 = vmatprep.mubr.bf16.mxu0 0
  %1203 = vmatmul.mubr.bf16.gmra.mrb[0].mxu0 %v1168
  %v1204 = vpop.f32.mrb[0].mxu0
  %v1205 = vadd.f32 0.0, %v1204
  %v1206 = vpop.f32.mrb[0].mxu0
  %v1207 = vpop.f32.mrb[0].mxu0
  %v1208 = vpop.f32.mrb[0].mxu0
  %1209 = vdwg.mxu0
  %v1210 = vadd.f32 %v832, %v1205
  %v1211 = vmul.f32 %v1210, %v29
  %v1212 = vxor.u32 %v1211, 2147483648
  %v1213 = vmul.f32 %v1212, 1.442695
  %v1214 = vpow.pop %v1213
  %v1215 = vadd.f32 %v1214, 1.0
  %v1216 = vrcp.pop %v1215
  %v1217 = vmul.f32 1.0, %v1216
  %v1218 = vmul.f32 %v1217, 2.0
  %v1219 = vsub.f32 %v1218, 1.0
  %v1220 = vsel %vm28, %v1219, %v1217
  %v1221 = vmul.f32 %v1220, %v1161
  %1223 = vrot.lane.b32.xlu0 %v1220, 64
  %v1224 = vpop.permute.xlu0 %1223
  %v1226 = vmul.f32 %v1220, %v1224
  %1228 = vrot.lane.b32.xlu0 %v1226, 32
  %v1229 = vpop.permute.xlu0 %1228
  %v1231 = vadd.f32 %v1221, %v1229
  %v1232 = vtanh.pop %v1231
  %1234 = vrot.lane.b32.xlu0 %v1232, 64
  %v1235 = vpop.permute.xlu0 %1234
  %v1237 = vmul.f32 %v1220, %v1235
  %v1238 = vsel %vm479, %v1231, %v1161
  %v1239 = vsel %vm479, %v1237, %v1162
  %v1240 = vpack.c.bf16 %v1239, %v1239
  %1242 = vrot.lane.b32.xlu0 %v1240, 32
  %v1243 = vpop.permute.xlu0 %1242
  %v1245 = vsel %vm70, %v1243, 0
  %1247 = vmatprep.subr.bf16.mxu0 0
  %1248 = vmatpush1.bf16.msra.mxu0 %v858
  %1249 = vmatprep.subr.bf16.mxu0 0
  %1250 = vmatpush1.bf16.msra.mxu0 %v859
  %1251 = vmatprep.subr.bf16.mxu0 0
  %1252 = vmatpush1.bf16.msra.mxu0 0
  %1253 = vmatprep.subr.bf16.mxu0 0
  %1254 = vmatpush1.bf16.msra.mxu0 0
  %1255 = vmatprep.subr.bf16.mxu0 0
  %1256 = vmatpush1.bf16.msra.mxu0 0
  %1257 = vmatprep.subr.bf16.mxu0 0
  %1258 = vmatpush1.bf16.msra.mxu0 0
  %1259 = vmatprep.subr.bf16.mxu0 0
  %1260 = vmatpush1.bf16.msra.mxu0 0
  %1261 = vmatprep.subr.bf16.mxu0 0
  %1262 = vmatpush1.bf16.msra.mxu0 0
  %1263 = vmatprep.subr.bf16.mxu0 0
  %1264 = vmatpush1.bf16.msra.mxu0 0
  %1265 = vmatprep.subr.bf16.mxu0 0
  %1266 = vmatpush1.bf16.msra.mxu0 0
  %1267 = vmatprep.subr.bf16.mxu0 0
  %1268 = vmatpush1.bf16.msra.mxu0 0
  %1269 = vmatprep.subr.bf16.mxu0 0
  %1270 = vmatpush1.bf16.msra.mxu0 0
  %1271 = vmatprep.subr.bf16.mxu0 0
  %1272 = vmatpush1.bf16.msra.mxu0 0
  %1273 = vmatprep.subr.bf16.mxu0 0
  %1274 = vmatpush1.bf16.msra.mxu0 0
  %1275 = vmatprep.subr.bf16.mxu0 0
  %1276 = vmatpush1.bf16.msra.mxu0 0
  %1277 = vmatprep.subr.bf16.mxu0 0
  %1278 = vmatpush1.bf16.msra.mxu0 0
  %1279 = vmatprep.mubr.bf16.mxu0 0
  %1280 = vmatmul.mubr.bf16.gmra.mrb[0].mxu0 %v1245
  %v1281 = vpop.f32.mrb[0].mxu0
  %v1282 = vadd.f32 0.0, %v1281
  %v1283 = vpop.f32.mrb[0].mxu0
  %v1284 = vpop.f32.mrb[0].mxu0
  %v1285 = vpop.f32.mrb[0].mxu0
  %1286 = vdwg.mxu0
  %v1287 = vadd.f32 %v835, %v1282
  %v1288 = vmul.f32 %v1287, %v29
  %v1289 = vxor.u32 %v1288, 2147483648
  %v1290 = vmul.f32 %v1289, 1.442695
  %v1291 = vpow.pop %v1290
  %v1292 = vadd.f32 %v1291, 1.0
  %v1293 = vrcp.pop %v1292
  %v1294 = vmul.f32 1.0, %v1293
  %v1295 = vmul.f32 %v1294, 2.0
  %v1296 = vsub.f32 %v1295, 1.0
  %v1297 = vsel %vm28, %v1296, %v1294
  %v1298 = vmul.f32 %v1297, %v1238
  %1300 = vrot.lane.b32.xlu0 %v1297, 64
  %v1301 = vpop.permute.xlu0 %1300
  %v1303 = vmul.f32 %v1297, %v1301
  %1305 = vrot.lane.b32.xlu0 %v1303, 32
  %v1306 = vpop.permute.xlu0 %1305
  %v1308 = vadd.f32 %v1298, %v1306
  %v1309 = vtanh.pop %v1308
  %1311 = vrot.lane.b32.xlu0 %v1309, 64
  %v1312 = vpop.permute.xlu0 %1311
  %v1314 = vmul.f32 %v1297, %v1312
  %v1315 = vsel %vm562, %v1308, %v1238
  %v1316 = vsel %vm562, %v1314, %v1239
  %v1317 = vpack.c.bf16 %v1316, %v1316
  %1319 = vrot.lane.b32.xlu0 %v1317, 32
  %v1320 = vpop.permute.xlu0 %1319
  %v1322 = vsel %vm70, %v1320, 0
  %1324 = vmatprep.subr.bf16.mxu0 0
  %1325 = vmatpush1.bf16.msra.mxu0 %v858
  %1326 = vmatprep.subr.bf16.mxu0 0
  %1327 = vmatpush1.bf16.msra.mxu0 %v859
  %1328 = vmatprep.subr.bf16.mxu0 0
  %1329 = vmatpush1.bf16.msra.mxu0 0
  %1330 = vmatprep.subr.bf16.mxu0 0
  %1331 = vmatpush1.bf16.msra.mxu0 0
  %1332 = vmatprep.subr.bf16.mxu0 0
  %1333 = vmatpush1.bf16.msra.mxu0 0
  %1334 = vmatprep.subr.bf16.mxu0 0
  %1335 = vmatpush1.bf16.msra.mxu0 0
  %1336 = vmatprep.subr.bf16.mxu0 0
  %1337 = vmatpush1.bf16.msra.mxu0 0
  %1338 = vmatprep.subr.bf16.mxu0 0
  %1339 = vmatpush1.bf16.msra.mxu0 0
  %1340 = vmatprep.subr.bf16.mxu0 0
  %1341 = vmatpush1.bf16.msra.mxu0 0
  %1342 = vmatprep.subr.bf16.mxu0 0
  %1343 = vmatpush1.bf16.msra.mxu0 0
  %1344 = vmatprep.subr.bf16.mxu0 0
  %1345 = vmatpush1.bf16.msra.mxu0 0
  %1346 = vmatprep.subr.bf16.mxu0 0
  %1347 = vmatpush1.bf16.msra.mxu0 0
  %1348 = vmatprep.subr.bf16.mxu0 0
  %1349 = vmatpush1.bf16.msra.mxu0 0
  %1350 = vmatprep.subr.bf16.mxu0 0
  %1351 = vmatpush1.bf16.msra.mxu0 0
  %1352 = vmatprep.subr.bf16.mxu0 0
  %1353 = vmatpush1.bf16.msra.mxu0 0
  %1354 = vmatprep.subr.bf16.mxu0 0
  %1355 = vmatpush1.bf16.msra.mxu0 0
  %1356 = vmatprep.mubr.bf16.mxu0 0
  %1357 = vmatmul.mubr.bf16.gmra.mrb[0].mxu0 %v1322
  %v1358 = vpop.f32.mrb[0].mxu0
  %v1359 = vadd.f32 0.0, %v1358
  %v1360 = vpop.f32.mrb[0].mxu0
  %v1361 = vpop.f32.mrb[0].mxu0
  %v1362 = vpop.f32.mrb[0].mxu0
  %1363 = vdwg.mxu0
  %v1364 = vadd.f32 %v840, %v1359
  %v1365 = vmul.f32 %v1364, %v29
  %v1366 = vxor.u32 %v1365, 2147483648
  %v1367 = vmul.f32 %v1366, 1.442695
  %v1368 = vpow.pop %v1367
  %v1369 = vadd.f32 %v1368, 1.0
  %v1370 = vrcp.pop %v1369
  %v1371 = vmul.f32 1.0, %v1370
  %v1372 = vmul.f32 %v1371, 2.0
  %v1373 = vsub.f32 %v1372, 1.0
  %v1374 = vsel %vm28, %v1373, %v1371
  %v1375 = vmul.f32 %v1374, %v1315
  %1377 = vrot.lane.b32.xlu0 %v1374, 64
  %v1378 = vpop.permute.xlu0 %1377
  %v1380 = vmul.f32 %v1374, %v1378
  %1382 = vrot.lane.b32.xlu0 %v1380, 32
  %v1383 = vpop.permute.xlu0 %1382
  %v1385 = vadd.f32 %v1375, %v1383
  %v1386 = vtanh.pop %v1385
  %1388 = vrot.lane.b32.xlu0 %v1386, 64
  %v1389 = vpop.permute.xlu0 %1388
  %v1391 = vmul.f32 %v1374, %v1389
  %v1392 = vsel %vm645, %v1385, %v1315
  %v1393 = vsel %vm645, %v1391, %v1316
  %v1394 = vpack.c.bf16 %v1393, %v1393
  %1396 = vrot.lane.b32.xlu0 %v1394, 32
  %v1397 = vpop.permute.xlu0 %1396
  %v1399 = vsel %vm70, %v1397, 0
  %1401 = vmatprep.subr.bf16.mxu0 0
  %1402 = vmatpush1.bf16.msra.mxu0 %v858
  %1403 = vmatprep.subr.bf16.mxu0 0
  %1404 = vmatpush1.bf16.msra.mxu0 %v859
  %1405 = vmatprep.subr.bf16.mxu0 0
  %1406 = vmatpush1.bf16.msra.mxu0 0
  %1407 = vmatprep.subr.bf16.mxu0 0
  %1408 = vmatpush1.bf16.msra.mxu0 0
  %1409 = vmatprep.subr.bf16.mxu0 0
  %1410 = vmatpush1.bf16.msra.mxu0 0
  %1411 = vmatprep.subr.bf16.mxu0 0
  %1412 = vmatpush1.bf16.msra.mxu0 0
  %1413 = vmatprep.subr.bf16.mxu0 0
  %1414 = vmatpush1.bf16.msra.mxu0 0
  %1415 = vmatprep.subr.bf16.mxu0 0
  %1416 = vmatpush1.bf16.msra.mxu0 0
  %1417 = vmatprep.subr.bf16.mxu0 0
  %1418 = vmatpush1.bf16.msra.mxu0 0
  %1419 = vmatprep.subr.bf16.mxu0 0
  %1420 = vmatpush1.bf16.msra.mxu0 0
  %1421 = vmatprep.subr.bf16.mxu0 0
  %1422 = vmatpush1.bf16.msra.mxu0 0
  %1423 = vmatprep.subr.bf16.mxu0 0
  %1424 = vmatpush1.bf16.msra.mxu0 0
  %1425 = vmatprep.subr.bf16.mxu0 0
  %1426 = vmatpush1.bf16.msra.mxu0 0
  %1427 = vmatprep.subr.bf16.mxu0 0
  %1428 = vmatpush1.bf16.msra.mxu0 0
  %1429 = vmatprep.subr.bf16.mxu0 0
  %1430 = vmatpush1.bf16.msra.mxu0 0
  %1431 = vmatprep.subr.bf16.mxu0 0
  %1432 = vmatpush1.bf16.msra.mxu0 0
  %1433 = vmatprep.mubr.bf16.mxu0 0
  %1434 = vmatmul.mubr.bf16.gmra.mrb[0].mxu0 %v1399
  %v1435 = vpop.f32.mrb[0].mxu0
  %v1436 = vadd.f32 0.0, %v1435
  %v1437 = vpop.f32.mrb[0].mxu0
  %v1438 = vpop.f32.mrb[0].mxu0
  %v1439 = vpop.f32.mrb[0].mxu0
  %1440 = vdwg.mxu0
  %v1441 = vadd.f32 %v843, %v1436
  %v1442 = vmul.f32 %v1441, %v29
  %v1443 = vxor.u32 %v1442, 2147483648
  %v1444 = vmul.f32 %v1443, 1.442695
  %v1445 = vpow.pop %v1444
  %v1446 = vadd.f32 %v1445, 1.0
  %v1447 = vrcp.pop %v1446
  %v1448 = vmul.f32 1.0, %v1447
  %v1449 = vmul.f32 %v1448, 2.0
  %v1450 = vsub.f32 %v1449, 1.0
  %v1451 = vsel %vm28, %v1450, %v1448
  %v1452 = vmul.f32 %v1451, %v1392
  %1454 = vrot.lane.b32.xlu0 %v1451, 64
  %v1455 = vpop.permute.xlu0 %1454
  %v1457 = vmul.f32 %v1451, %v1455
  %1459 = vrot.lane.b32.xlu0 %v1457, 32
  %v1460 = vpop.permute.xlu0 %1459
  %v1462 = vadd.f32 %v1452, %v1460
  %v1463 = vtanh.pop %v1462
  %1465 = vrot.lane.b32.xlu0 %v1463, 64
  %v1466 = vpop.permute.xlu0 %1465
  %v1468 = vmul.f32 %v1451, %v1466
  %v1469 = vsel %vm728, %v1468, %v1393
  %1471 = vrot.lane.b32.xlu0 %v1469, 32
  %v1472 = vpop.permute.xlu0 %1471
  %1474 = vst.msk [vmem:[%s6] sm:$0xff] %vm70, %v1472
  // Predicated region
  $region26: #{lstm_network_forward.1} parent=0 // pred_check
    _
  $region27: #{lstm_network_forward.1} parent=0 // pred_check_branch
    %1476 = sbr.rel (0) target = $region29
  $region28: #{lstm_network_forward.1} parent=0 // pred_region
    _
  $region29: #{lstm_network_forward.1} parent=0 // pred_fallthru
    _
  // Predicated region
  $region30: #{lstm_network_forward.1} parent=0 // pred_check
    _
  $region31: #{lstm_network_forward.1} parent=0 // pred_check_branch
    %1478 = sbr.rel (0) target = $region33
  $region32: #{lstm_network_forward.1} parent=0 // pred_region
    _
  $region33: #{lstm_network_forward.1} parent=0 // pred_fallthru
    _

</llo_original>
